<compile_context>
chip_gen: v7x
topology: tpu7x:2x2x1
jax: 0.10.0
libtpu: 0.0.40
codegen_flags: <defaults>
</compile_context>

<pallas_src>
import math

import jax
import jax.numpy as jnp
from jax.experimental import pallas as pl
from jax.experimental.pallas import tpu as pltpu

NEG_SLOPE = 0.01  # nn.LeakyReLU default negative_slope


def _leaky_relu(x):
    return jnp.where(x >= 0, x, NEG_SLOPE * x)


# --------------------------------------------------------------------------
# Fused kernel: all LSTM layers + LeakyReLU -> fc1 -> LeakyReLU -> fc2
# --------------------------------------------------------------------------
def _make_fused_kernel(n_layers, T, B, H):
    """Kernel args: x2d, (wih_t, whh_t, b) * n_layers, fc1_wt, fc1_b, fc2_wt, fc2_b
    -> out (n_layers*B, out_dim); scratch: hseq (T*B, H), hn (n_layers*B, H)."""

    def kernel(x2d_ref, *refs):
        layer_refs = refs[:3 * n_layers]
        (fc1_wt_ref, fc1_b_ref, fc2_wt_ref, fc2_b_ref,
         out_ref, hseq_scr, hn_scr) = refs[3 * n_layers:]

        for l in range(n_layers):
            wih_t_ref = layer_refs[3 * l + 0]   # (in_l, 4H)
            whh_t_ref = layer_refs[3 * l + 1]   # (H, 4H)
            b_ref = layer_refs[3 * l + 2]       # (1, 4H)  (b_ih + b_hh)

            # ---- Hoisted input projection for ALL timesteps of this layer ----
            # One (T*B, in) @ (in, 4H) matmul instead of T tiny M=B matmuls.
            x_in = x2d_ref[...] if l == 0 else hseq_scr[...]
            xp = (jnp.dot(x_in, wih_t_ref[...],
                          preferred_element_type=jnp.float32)
                  + b_ref[...])                 # (T*B, 4H), bias folded in once

            whh_t = whh_t_ref[...]              # invariant: load once, reuse per step
            h = jnp.zeros((B, H), jnp.float32)
            c = jnp.zeros((B, H), jnp.float32)

            # Serial recurrence; T=8 is small so a static unroll is fine.
            for t in range(T):
                gates = xp[t * B:(t + 1) * B, :] + jnp.dot(
                    h, whh_t, preferred_element_type=jnp.float32)   # (B, 4H)
                # Full-width (B, 4H) transcendentals on the EUP, then take the
                # four H-wide gate views from the precomputed results.
                sig = jax.nn.sigmoid(gates)
                th = jnp.tanh(gates)
                i_g = sig[:, 0 * H:1 * H]       # PyTorch gate order: i, f, g, o
                f_g = sig[:, 1 * H:2 * H]
                g_g = th[:, 2 * H:3 * H]
                o_g = sig[:, 3 * H:4 * H]
                c = f_g * c + i_g * g_g
                h = o_g * jnp.tanh(c)
                if l < n_layers - 1:
                    # Next layer's input sequence stays in VMEM scratch (no HBM).
                    hseq_scr[t * B:(t + 1) * B, :] = h

            hn_scr[l * B:(l + 1) * B, :] = h    # final hidden state of this layer

        # ---- Head: LeakyReLU -> fc1 -> LeakyReLU -> fc2 (same kernel, no launch) ----
        hn = _leaky_relu(hn_scr[...])                                  # (n_layers*B, H)
        z1 = _leaky_relu(jnp.dot(hn, fc1_wt_ref[...],
                                 preferred_element_type=jnp.float32)
                         + fc1_b_ref[...])                             # (n_layers*B, H/2)
        z2 = jnp.dot(z1, fc2_wt_ref[...],
                     preferred_element_type=jnp.float32) + fc2_b_ref[...]
        out_ref[...] = z2.astype(out_ref.dtype)

    return kernel


# --------------------------------------------------------------------------
# Jitted forward: one pallas_call for the whole network
# --------------------------------------------------------------------------
@jax.jit
def vanilla_lstm_forward(prepared, x):
    B, T, in_dim = x.shape
    lstm = prepared["lstm"]
    n_layers = len(lstm)
    H = lstm[0][1].shape[0]                  # whh_t: (H, 4H)
    out_dim = prepared["fc2_wt"].shape[1]

    # Row order t-major / batch-minor so xp[t*B:(t+1)*B] is exactly one timestep.
    x2d = jnp.transpose(x, (1, 0, 2)).reshape(T * B, in_dim)

    args = [x2d]
    for (wih_t, whh_t, b) in lstm:
        args += [wih_t, whh_t, b]
    args += [prepared["fc1_wt"], prepared["fc1_b"],
             prepared["fc2_wt"], prepared["fc2_b"]]

    vmem = pl.BlockSpec(memory_space=pltpu.MemorySpace.VMEM)
    return pl.pallas_call(
        _make_fused_kernel(n_layers, T, B, H),
        out_shape=jax.ShapeDtypeStruct((n_layers * B, out_dim), jnp.float32),
        in_specs=[vmem] * len(args),
        out_specs=vmem,
        scratch_shapes=[pltpu.VMEM((T * B, H), jnp.float32),           # layer->layer hidden seq
                        pltpu.VMEM((n_layers * B, H), jnp.float32)],   # stacked hn
    )(*args)


# --------------------------------------------------------------------------
# Parameter construction (PyTorch-style shapes & init range) + one-time prep
# --------------------------------------------------------------------------
def init_params(key, input_dim, hidden_dim, n_layers, output_dim):
    params = {"lstm": []}
    k = 1.0 / math.sqrt(hidden_dim)
    for layer in range(n_layers):
        in_sz = input_dim if layer == 0 else hidden_dim
        key, k1, k2, k3, k4 = jax.random.split(key, 5)
        w_ih = jax.random.uniform(k1, (4 * hidden_dim, in_sz), jnp.float32, -k, k)
        w_hh = jax.random.uniform(k2, (4 * hidden_dim, hidden_dim), jnp.float32, -k, k)
        b_ih = jax.random.uniform(k3, (4 * hidden_dim,), jnp.float32, -k, k)
        b_hh = jax.random.uniform(k4, (4 * hidden_dim,), jnp.float32, -k, k)
        params["lstm"].append((w_ih, w_hh, b_ih, b_hh))
    h2 = hidden_dim // 2
    key, k1, k2, k3, k4 = jax.random.split(key, 5)
    kf1 = 1.0 / math.sqrt(hidden_dim)
    kf2 = 1.0 / math.sqrt(h2)
    params["fc1_w"] = jax.random.uniform(k1, (h2, hidden_dim), jnp.float32, -kf1, kf1)
    params["fc1_b"] = jax.random.uniform(k2, (h2,), jnp.float32, -kf1, kf1)
    params["fc2_w"] = jax.random.uniform(k3, (output_dim, h2), jnp.float32, -kf2, kf2)
    params["fc2_b"] = jax.random.uniform(k4, (output_dim,), jnp.float32, -kf2, kf2)
    return params


def prepare_params(params):
    """Pre-transpose weights and pre-sum b_ih+b_hh ONCE (kernel-ready layout)."""
    prepared = {"lstm": []}
    for (w_ih, w_hh, b_ih, b_hh) in params["lstm"]:
        prepared["lstm"].append((jnp.asarray(w_ih.T),                  # (in, 4H)
                                 jnp.asarray(w_hh.T),                  # (H, 4H)
                                 (b_ih + b_hh).reshape(1, -1)))        # (1, 4H)
    prepared["fc1_wt"] = jnp.asarray(params["fc1_w"].T)
    prepared["fc1_b"] = params["fc1_b"].reshape(1, -1)
    prepared["fc2_wt"] = jnp.asarray(params["fc2_w"].T)
    prepared["fc2_b"] = params["fc2_b"].reshape(1, -1)
    return prepared


# --------------------------------------------------------------------------
# Pure-JAX reference (correctness check only)
# --------------------------------------------------------------------------
def reference_forward(params, x, hidden_dim):
    B, T, _ = x.shape
    seq_in = x
    h_finals = []
    for (w_ih, w_hh, b_ih, b_hh) in params["lstm"]:
        h = jnp.zeros((B, hidden_dim), jnp.float32)
        c = jnp.zeros((B, hidden_dim), jnp.float32)
        outs = []
        for t in range(T):
            gates = seq_in[:, t, :] @ w_ih.T + h @ w_hh.T + b_ih + b_hh
            i_g, f_g, g_g, o_g = jnp.split(gates, 4, axis=1)
            i_g = jax.nn.sigmoid(i_g)
            f_g = jax.nn.sigmoid(f_g)
            g_g = jnp.tanh(g_g)
            o_g = jax.nn.sigmoid(o_g)
            c = f_g * c + i_g * g_g
            h = o_g * jnp.tanh(c)
            outs.append(h)
        seq_in = jnp.stack(outs, axis=1)
        h_finals.append(h)
    hn_flat = jnp.stack(h_finals, axis=0).reshape(-1, hidden_dim)
    hn_flat = _leaky_relu(hn_flat)
    z1 = _leaky_relu(hn_flat @ params["fc1_w"].T + params["fc1_b"])
    return z1 @ params["fc2_w"].T + params["fc2_b"]


if __name__ == "__main__":
    batch, seq, input_dim = 2, 8, 16
    hidden_dim, n_layers, output_dim = 32, 2, 4

    key = jax.random.PRNGKey(0)
    key, xkey = jax.random.split(key)
    x = jax.random.normal(xkey, (batch, seq, input_dim), jnp.float32)

    params = init_params(key, input_dim, hidden_dim, n_layers, output_dim)
    prepared = prepare_params(params)

    out = vanilla_lstm_forward(prepared, x)
    out = jax.block_until_ready(out)

    ref = reference_forward(params, x, hidden_dim)
    assert out.shape == (n_layers * batch, output_dim), out.shape
    # Tolerance covers MXU default-precision differences between the XLA reference
    # dot path and the in-kernel f32 matmuls (accumulated over 2 layers x 8 steps).
    assert jnp.allclose(out, ref, rtol=1e-2, atol=1e-2), \
        f"max abs err {jnp.max(jnp.abs(out - ref))}"

    print("KERNEL_OK")
</pallas_src>

<mosaic_0001>
module attributes {stable_mosaic.version = 11 : i64} {
  func.func @kernel(%arg0: memref<16x16xf32, #tpu.memory_space<vmem>>, %arg1: memref<16x128xf32, #tpu.memory_space<vmem>>, %arg2: memref<32x128xf32, #tpu.memory_space<vmem>>, %arg3: memref<1x128xf32, #tpu.memory_space<vmem>>, %arg4: memref<32x128xf32, #tpu.memory_space<vmem>>, %arg5: memref<32x128xf32, #tpu.memory_space<vmem>>, %arg6: memref<1x128xf32, #tpu.memory_space<vmem>>, %arg7: memref<32x16xf32, #tpu.memory_space<vmem>>, %arg8: memref<1x16xf32, #tpu.memory_space<vmem>>, %arg9: memref<16x4xf32, #tpu.memory_space<vmem>>, %arg10: memref<1x4xf32, #tpu.memory_space<vmem>>, %arg11: memref<4x4xf32, #tpu.memory_space<vmem>>, %arg12: memref<16x32xf32, #tpu.memory_space<vmem>>, %arg13: memref<4x32xf32, #tpu.memory_space<vmem>>) attributes {dimension_semantics = [], scalar_prefetch = 0 : i64, scratch_operands = 2 : i64, tpu.core_type = #tpu.core_type<tc>} {
    %c0 = arith.constant 0 : index
    %c0_0 = arith.constant 0 : index
    %0 = vector.load %arg0[%c0, %c0_0] : memref<16x16xf32, #tpu.memory_space<vmem>>, vector<16x16xf32>
    %c0_1 = arith.constant 0 : index
    %c0_2 = arith.constant 0 : index
    %1 = vector.load %arg1[%c0_1, %c0_2] : memref<16x128xf32, #tpu.memory_space<vmem>>, vector<16x128xf32>
    %cst = arith.constant dense<0.000000e+00> : vector<16x128xf32>
    %2 = tpu.matmul %0, %1, %cst {dimension_numbers = #tpu.dot_dimension_numbers<[1], [0], [0], [1], [0, 0, 1, 1], [], []>} : vector<16x16xf32>, vector<16x128xf32>, vector<16x128xf32> -> vector<16x128xf32>
    %c0_3 = arith.constant 0 : index
    %c0_4 = arith.constant 0 : index
    %3 = vector.load %arg3[%c0_3, %c0_4] : memref<1x128xf32, #tpu.memory_space<vmem>>, vector<1x128xf32>
    %4 = vector.broadcast %3 : vector<1x128xf32> to vector<16x128xf32>
    %5 = arith.addf %2, %4 : vector<16x128xf32>
    %c0_5 = arith.constant 0 : index
    %c0_6 = arith.constant 0 : index
    %6 = vector.load %arg2[%c0_5, %c0_6] : memref<32x128xf32, #tpu.memory_space<vmem>>, vector<32x128xf32>
    %cst_7 = arith.constant 0.000000e+00 : f32
    %7 = vector.broadcast %cst_7 : f32 to vector<2x32xf32>
    %cst_8 = arith.constant 0.000000e+00 : f32
    %8 = vector.broadcast %cst_8 : f32 to vector<2x32xf32>
    %9 = vector.extract_strided_slice %5 {offsets = [0, 0], sizes = [2, 128], strides = [1, 1]} : vector<16x128xf32> to vector<2x128xf32>
    %cst_9 = arith.constant dense<0.000000e+00> : vector<2x128xf32>
    %10 = tpu.matmul %7, %6, %cst_9 {dimension_numbers = #tpu.dot_dimension_numbers<[1], [0], [0], [1], [0, 0, 1, 1], [], []>} : vector<2x32xf32>, vector<32x128xf32>, vector<2x128xf32> -> vector<2x128xf32>
    %11 = arith.addf %9, %10 : vector<2x128xf32>
    %12 = arith.negf %11 : vector<2x128xf32>
    %13 = math.exp %12 : vector<2x128xf32>
    %cst_10 = arith.constant 1.000000e+00 : f32
    %14 = vector.broadcast %cst_10 : f32 to vector<2x128xf32>
    %15 = arith.addf %14, %13 : vector<2x128xf32>
    %16 = arith.divf %14, %15 : vector<2x128xf32>
    %17 = math.tanh %11 : vector<2x128xf32>
    %18 = vector.extract_strided_slice %16 {offsets = [0, 0], sizes = [2, 32], strides = [1, 1]} : vector<2x128xf32> to vector<2x32xf32>
    %19 = vector.extract_strided_slice %16 {offsets = [0, 32], sizes = [2, 32], strides = [1, 1]} : vector<2x128xf32> to vector<2x32xf32>
    %20 = vector.extract_strided_slice %17 {offsets = [0, 64], sizes = [2, 32], strides = [1, 1]} : vector<2x128xf32> to vector<2x32xf32>
    %21 = vector.extract_strided_slice %16 {offsets = [0, 96], sizes = [2, 32], strides = [1, 1]} : vector<2x128xf32> to vector<2x32xf32>
    %22 = arith.mulf %19, %8 : vector<2x32xf32>
    %23 = arith.mulf %18, %20 : vector<2x32xf32>
    %24 = arith.addf %22, %23 : vector<2x32xf32>
    %25 = math.tanh %24 : vector<2x32xf32>
    %26 = arith.mulf %21, %25 : vector<2x32xf32>
    %c0_11 = arith.constant 0 : index
    %c0_12 = arith.constant 0 : index
    %27 = vector.load %arg12[%c0_11, %c0_12] : memref<16x32xf32, #tpu.memory_space<vmem>>, vector<2x32xf32>
    tpu.vector_store %arg12[%c0_11, %c0_12], %26 {strides = array<i32>} : memref<16x32xf32, #tpu.memory_space<vmem>>, vector<2x32xf32>,
    %28 = vector.extract_strided_slice %5 {offsets = [2, 0], sizes = [2, 128], strides = [1, 1]} : vector<16x128xf32> to vector<2x128xf32>
    %cst_13 = arith.constant dense<0.000000e+00> : vector<2x128xf32>
    %29 = tpu.matmul %26, %6, %cst_13 {dimension_numbers = #tpu.dot_dimension_numbers<[1], [0], [0], [1], [0, 0, 1, 1], [], []>} : vector<2x32xf32>, vector<32x128xf32>, vector<2x128xf32> -> vector<2x128xf32>
    %30 = arith.addf %28, %29 : vector<2x128xf32>
    %31 = arith.negf %30 : vector<2x128xf32>
    %32 = math.exp %31 : vector<2x128xf32>
    %cst_14 = arith.constant 1.000000e+00 : f32
    %33 = vector.broadcast %cst_14 : f32 to vector<2x128xf32>
    %34 = arith.addf %33, %32 : vector<2x128xf32>
    %35 = arith.divf %33, %34 : vector<2x128xf32>
    %36 = math.tanh %30 : vector<2x128xf32>
    %37 = vector.extract_strided_slice %35 {offsets = [0, 0], sizes = [2, 32], strides = [1, 1]} : vector<2x128xf32> to vector<2x32xf32>
    %38 = vector.extract_strided_slice %35 {offsets = [0, 32], sizes = [2, 32], strides = [1, 1]} : vector<2x128xf32> to vector<2x32xf32>
    %39 = vector.extract_strided_slice %36 {offsets = [0, 64], sizes = [2, 32], strides = [1, 1]} : vector<2x128xf32> to vector<2x32xf32>
    %40 = vector.extract_strided_slice %35 {offsets = [0, 96], sizes = [2, 32], strides = [1, 1]} : vector<2x128xf32> to vector<2x32xf32>
    %41 = arith.mulf %38, %24 : vector<2x32xf32>
    %42 = arith.mulf %37, %39 : vector<2x32xf32>
    %43 = arith.addf %41, %42 : vector<2x32xf32>
    %44 = math.tanh %43 : vector<2x32xf32>
    %45 = arith.mulf %40, %44 : vector<2x32xf32>
    %c2 = arith.constant 2 : index
    %c0_15 = arith.constant 0 : index
    %46 = vector.load %arg12[%c2, %c0_15] : memref<16x32xf32, #tpu.memory_space<vmem>>, vector<2x32xf32>
    tpu.vector_store %arg12[%c2, %c0_15], %45 {strides = array<i32>} : memref<16x32xf32, #tpu.memory_space<vmem>>, vector<2x32xf32>,
    %47 = vector.extract_strided_slice %5 {offsets = [4, 0], sizes = [2, 128], strides = [1, 1]} : vector<16x128xf32> to vector<2x128xf32>
    %cst_16 = arith.constant dense<0.000000e+00> : vector<2x128xf32>
    %48 = tpu.matmul %45, %6, %cst_16 {dimension_numbers = #tpu.dot_dimension_numbers<[1], [0], [0], [1], [0, 0, 1, 1], [], []>} : vector<2x32xf32>, vector<32x128xf32>, vector<2x128xf32> -> vector<2x128xf32>
    %49 = arith.addf %47, %48 : vector<2x128xf32>
    %50 = arith.negf %49 : vector<2x128xf32>
    %51 = math.exp %50 : vector<2x128xf32>
    %cst_17 = arith.constant 1.000000e+00 : f32
    %52 = vector.broadcast %cst_17 : f32 to vector<2x128xf32>
    %53 = arith.addf %52, %51 : vector<2x128xf32>
    %54 = arith.divf %52, %53 : vector<2x128xf32>
    %55 = math.tanh %49 : vector<2x128xf32>
    %56 = vector.extract_strided_slice %54 {offsets = [0, 0], sizes = [2, 32], strides = [1, 1]} : vector<2x128xf32> to vector<2x32xf32>
    %57 = vector.extract_strided_slice %54 {offsets = [0, 32], sizes = [2, 32], strides = [1, 1]} : vector<2x128xf32> to vector<2x32xf32>
    %58 = vector.extract_strided_slice %55 {offsets = [0, 64], sizes = [2, 32], strides = [1, 1]} : vector<2x128xf32> to vector<2x32xf32>
    %59 = vector.extract_strided_slice %54 {offsets = [0, 96], sizes = [2, 32], strides = [1, 1]} : vector<2x128xf32> to vector<2x32xf32>
    %60 = arith.mulf %57, %43 : vector<2x32xf32>
    %61 = arith.mulf %56, %58 : vector<2x32xf32>
    %62 = arith.addf %60, %61 : vector<2x32xf32>
    %63 = math.tanh %62 : vector<2x32xf32>
    %64 = arith.mulf %59, %63 : vector<2x32xf32>
    %c4 = arith.constant 4 : index
    %c0_18 = arith.constant 0 : index
    %65 = vector.load %arg12[%c4, %c0_18] : memref<16x32xf32, #tpu.memory_space<vmem>>, vector<2x32xf32>
    tpu.vector_store %arg12[%c4, %c0_18], %64 {strides = array<i32>} : memref<16x32xf32, #tpu.memory_space<vmem>>, vector<2x32xf32>,
    %66 = vector.extract_strided_slice %5 {offsets = [6, 0], sizes = [2, 128], strides = [1, 1]} : vector<16x128xf32> to vector<2x128xf32>
    %cst_19 = arith.constant dense<0.000000e+00> : vector<2x128xf32>
    %67 = tpu.matmul %64, %6, %cst_19 {dimension_numbers = #tpu.dot_dimension_numbers<[1], [0], [0], [1], [0, 0, 1, 1], [], []>} : vector<2x32xf32>, vector<32x128xf32>, vector<2x128xf32> -> vector<2x128xf32>
    %68 = arith.addf %66, %67 : vector<2x128xf32>
    %69 = arith.negf %68 : vector<2x128xf32>
    %70 = math.exp %69 : vector<2x128xf32>
    %cst_20 = arith.constant 1.000000e+00 : f32
    %71 = vector.broadcast %cst_20 : f32 to vector<2x128xf32>
    %72 = arith.addf %71, %70 : vector<2x128xf32>
    %73 = arith.divf %71, %72 : vector<2x128xf32>
    %74 = math.tanh %68 : vector<2x128xf32>
    %75 = vector.extract_strided_slice %73 {offsets = [0, 0], sizes = [2, 32], strides = [1, 1]} : vector<2x128xf32> to vector<2x32xf32>
    %76 = vector.extract_strided_slice %73 {offsets = [0, 32], sizes = [2, 32], strides = [1, 1]} : vector<2x128xf32> to vector<2x32xf32>
    %77 = vector.extract_strided_slice %74 {offsets = [0, 64], sizes = [2, 32], strides = [1, 1]} : vector<2x128xf32> to vector<2x32xf32>
    %78 = vector.extract_strided_slice %73 {offsets = [0, 96], sizes = [2, 32], strides = [1, 1]} : vector<2x128xf32> to vector<2x32xf32>
    %79 = arith.mulf %76, %62 : vector<2x32xf32>
    %80 = arith.mulf %75, %77 : vector<2x32xf32>
    %81 = arith.addf %79, %80 : vector<2x32xf32>
    %82 = math.tanh %81 : vector<2x32xf32>
    %83 = arith.mulf %78, %82 : vector<2x32xf32>
    %c6 = arith.constant 6 : index
    %c0_21 = arith.constant 0 : index
    %84 = vector.load %arg12[%c6, %c0_21] : memref<16x32xf32, #tpu.memory_space<vmem>>, vector<2x32xf32>
    tpu.vector_store %arg12[%c6, %c0_21], %83 {strides = array<i32>} : memref<16x32xf32, #tpu.memory_space<vmem>>, vector<2x32xf32>,
    %85 = vector.extract_strided_slice %5 {offsets = [8, 0], sizes = [2, 128], strides = [1, 1]} : vector<16x128xf32> to vector<2x128xf32>
    %cst_22 = arith.constant dense<0.000000e+00> : vector<2x128xf32>
    %86 = tpu.matmul %83, %6, %cst_22 {dimension_numbers = #tpu.dot_dimension_numbers<[1], [0], [0], [1], [0, 0, 1, 1], [], []>} : vector<2x32xf32>, vector<32x128xf32>, vector<2x128xf32> -> vector<2x128xf32>
    %87 = arith.addf %85, %86 : vector<2x128xf32>
    %88 = arith.negf %87 : vector<2x128xf32>
    %89 = math.exp %88 : vector<2x128xf32>
    %cst_23 = arith.constant 1.000000e+00 : f32
    %90 = vector.broadcast %cst_23 : f32 to vector<2x128xf32>
    %91 = arith.addf %90, %89 : vector<2x128xf32>
    %92 = arith.divf %90, %91 : vector<2x128xf32>
    %93 = math.tanh %87 : vector<2x128xf32>
    %94 = vector.extract_strided_slice %92 {offsets = [0, 0], sizes = [2, 32], strides = [1, 1]} : vector<2x128xf32> to vector<2x32xf32>
    %95 = vector.extract_strided_slice %92 {offsets = [0, 32], sizes = [2, 32], strides = [1, 1]} : vector<2x128xf32> to vector<2x32xf32>
    %96 = vector.extract_strided_slice %93 {offsets = [0, 64], sizes = [2, 32], strides = [1, 1]} : vector<2x128xf32> to vector<2x32xf32>
    %97 = vector.extract_strided_slice %92 {offsets = [0, 96], sizes = [2, 32], strides = [1, 1]} : vector<2x128xf32> to vector<2x32xf32>
    %98 = arith.mulf %95, %81 : vector<2x32xf32>
    %99 = arith.mulf %94, %96 : vector<2x32xf32>
    %100 = arith.addf %98, %99 : vector<2x32xf32>
    %101 = math.tanh %100 : vector<2x32xf32>
    %102 = arith.mulf %97, %101 : vector<2x32xf32>
    %c8 = arith.constant 8 : index
    %c0_24 = arith.constant 0 : index
    %103 = vector.load %arg12[%c8, %c0_24] : memref<16x32xf32, #tpu.memory_space<vmem>>, vector<2x32xf32>
    tpu.vector_store %arg12[%c8, %c0_24], %102 {strides = array<i32>} : memref<16x32xf32, #tpu.memory_space<vmem>>, vector<2x32xf32>,
    %104 = vector.extract_strided_slice %5 {offsets = [10, 0], sizes = [2, 128], strides = [1, 1]} : vector<16x128xf32> to vector<2x128xf32>
    %cst_25 = arith.constant dense<0.000000e+00> : vector<2x128xf32>
    %105 = tpu.matmul %102, %6, %cst_25 {dimension_numbers = #tpu.dot_dimension_numbers<[1], [0], [0], [1], [0, 0, 1, 1], [], []>} : vector<2x32xf32>, vector<32x128xf32>, vector<2x128xf32> -> vector<2x128xf32>
    %106 = arith.addf %104, %105 : vector<2x128xf32>
    %107 = arith.negf %106 : vector<2x128xf32>
    %108 = math.exp %107 : vector<2x128xf32>
    %cst_26 = arith.constant 1.000000e+00 : f32
    %109 = vector.broadcast %cst_26 : f32 to vector<2x128xf32>
    %110 = arith.addf %109, %108 : vector<2x128xf32>
    %111 = arith.divf %109, %110 : vector<2x128xf32>
    %112 = math.tanh %106 : vector<2x128xf32>
    %113 = vector.extract_strided_slice %111 {offsets = [0, 0], sizes = [2, 32], strides = [1, 1]} : vector<2x128xf32> to vector<2x32xf32>
    %114 = vector.extract_strided_slice %111 {offsets = [0, 32], sizes = [2, 32], strides = [1, 1]} : vector<2x128xf32> to vector<2x32xf32>
    %115 = vector.extract_strided_slice %112 {offsets = [0, 64], sizes = [2, 32], strides = [1, 1]} : vector<2x128xf32> to vector<2x32xf32>
    %116 = vector.extract_strided_slice %111 {offsets = [0, 96], sizes = [2, 32], strides = [1, 1]} : vector<2x128xf32> to vector<2x32xf32>
    %117 = arith.mulf %114, %100 : vector<2x32xf32>
    %118 = arith.mulf %113, %115 : vector<2x32xf32>
    %119 = arith.addf %117, %118 : vector<2x32xf32>
    %120 = math.tanh %119 : vector<2x32xf32>
    %121 = arith.mulf %116, %120 : vector<2x32xf32>
    %c10 = arith.constant 10 : index
    %c0_27 = arith.constant 0 : index
    %122 = vector.load %arg12[%c10, %c0_27] : memref<16x32xf32, #tpu.memory_space<vmem>>, vector<2x32xf32>
    tpu.vector_store %arg12[%c10, %c0_27], %121 {strides = array<i32>} : memref<16x32xf32, #tpu.memory_space<vmem>>, vector<2x32xf32>,
    %123 = vector.extract_strided_slice %5 {offsets = [12, 0], sizes = [2, 128], strides = [1, 1]} : vector<16x128xf32> to vector<2x128xf32>
    %cst_28 = arith.constant dense<0.000000e+00> : vector<2x128xf32>
    %124 = tpu.matmul %121, %6, %cst_28 {dimension_numbers = #tpu.dot_dimension_numbers<[1], [0], [0], [1], [0, 0, 1, 1], [], []>} : vector<2x32xf32>, vector<32x128xf32>, vector<2x128xf32> -> vector<2x128xf32>
    %125 = arith.addf %123, %124 : vector<2x128xf32>
    %126 = arith.negf %125 : vector<2x128xf32>
    %127 = math.exp %126 : vector<2x128xf32>
    %cst_29 = arith.constant 1.000000e+00 : f32
    %128 = vector.broadcast %cst_29 : f32 to vector<2x128xf32>
    %129 = arith.addf %128, %127 : vector<2x128xf32>
    %130 = arith.divf %128, %129 : vector<2x128xf32>
    %131 = math.tanh %125 : vector<2x128xf32>
    %132 = vector.extract_strided_slice %130 {offsets = [0, 0], sizes = [2, 32], strides = [1, 1]} : vector<2x128xf32> to vector<2x32xf32>
    %133 = vector.extract_strided_slice %130 {offsets = [0, 32], sizes = [2, 32], strides = [1, 1]} : vector<2x128xf32> to vector<2x32xf32>
    %134 = vector.extract_strided_slice %131 {offsets = [0, 64], sizes = [2, 32], strides = [1, 1]} : vector<2x128xf32> to vector<2x32xf32>
    %135 = vector.extract_strided_slice %130 {offsets = [0, 96], sizes = [2, 32], strides = [1, 1]} : vector<2x128xf32> to vector<2x32xf32>
    %136 = arith.mulf %133, %119 : vector<2x32xf32>
    %137 = arith.mulf %132, %134 : vector<2x32xf32>
    %138 = arith.addf %136, %137 : vector<2x32xf32>
    %139 = math.tanh %138 : vector<2x32xf32>
    %140 = arith.mulf %135, %139 : vector<2x32xf32>
    %c12 = arith.constant 12 : index
    %c0_30 = arith.constant 0 : index
    %141 = vector.load %arg12[%c12, %c0_30] : memref<16x32xf32, #tpu.memory_space<vmem>>, vector<2x32xf32>
    tpu.vector_store %arg12[%c12, %c0_30], %140 {strides = array<i32>} : memref<16x32xf32, #tpu.memory_space<vmem>>, vector<2x32xf32>,
    %142 = vector.extract_strided_slice %5 {offsets = [14, 0], sizes = [2, 128], strides = [1, 1]} : vector<16x128xf32> to vector<2x128xf32>
    %cst_31 = arith.constant dense<0.000000e+00> : vector<2x128xf32>
    %143 = tpu.matmul %140, %6, %cst_31 {dimension_numbers = #tpu.dot_dimension_numbers<[1], [0], [0], [1], [0, 0, 1, 1], [], []>} : vector<2x32xf32>, vector<32x128xf32>, vector<2x128xf32> -> vector<2x128xf32>
    %144 = arith.addf %142, %143 : vector<2x128xf32>
    %145 = arith.negf %144 : vector<2x128xf32>
    %146 = math.exp %145 : vector<2x128xf32>
    %cst_32 = arith.constant 1.000000e+00 : f32
    %147 = vector.broadcast %cst_32 : f32 to vector<2x128xf32>
    %148 = arith.addf %147, %146 : vector<2x128xf32>
    %149 = arith.divf %147, %148 : vector<2x128xf32>
    %150 = math.tanh %144 : vector<2x128xf32>
    %151 = vector.extract_strided_slice %149 {offsets = [0, 0], sizes = [2, 32], strides = [1, 1]} : vector<2x128xf32> to vector<2x32xf32>
    %152 = vector.extract_strided_slice %149 {offsets = [0, 32], sizes = [2, 32], strides = [1, 1]} : vector<2x128xf32> to vector<2x32xf32>
    %153 = vector.extract_strided_slice %150 {offsets = [0, 64], sizes = [2, 32], strides = [1, 1]} : vector<2x128xf32> to vector<2x32xf32>
    %154 = vector.extract_strided_slice %149 {offsets = [0, 96], sizes = [2, 32], strides = [1, 1]} : vector<2x128xf32> to vector<2x32xf32>
    %155 = arith.mulf %152, %138 : vector<2x32xf32>
    %156 = arith.mulf %151, %153 : vector<2x32xf32>
    %157 = arith.addf %155, %156 : vector<2x32xf32>
    %158 = math.tanh %157 : vector<2x32xf32>
    %159 = arith.mulf %154, %158 : vector<2x32xf32>
    %c14 = arith.constant 14 : index
    %c0_33 = arith.constant 0 : index
    %160 = vector.load %arg12[%c14, %c0_33] : memref<16x32xf32, #tpu.memory_space<vmem>>, vector<2x32xf32>
    tpu.vector_store %arg12[%c14, %c0_33], %159 {strides = array<i32>} : memref<16x32xf32, #tpu.memory_space<vmem>>, vector<2x32xf32>,
    %c0_34 = arith.constant 0 : index
    %c0_35 = arith.constant 0 : index
    %161 = vector.load %arg13[%c0_34, %c0_35] : memref<4x32xf32, #tpu.memory_space<vmem>>, vector<2x32xf32>
    tpu.vector_store %arg13[%c0_34, %c0_35], %159 {strides = array<i32>} : memref<4x32xf32, #tpu.memory_space<vmem>>, vector<2x32xf32>,
    %c0_36 = arith.constant 0 : index
    %c0_37 = arith.constant 0 : index
    %162 = vector.load %arg12[%c0_36, %c0_37] : memref<16x32xf32, #tpu.memory_space<vmem>>, vector<16x32xf32>
    %c0_38 = arith.constant 0 : index
    %c0_39 = arith.constant 0 : index
    %163 = vector.load %arg4[%c0_38, %c0_39] : memref<32x128xf32, #tpu.memory_space<vmem>>, vector<32x128xf32>
    %cst_40 = arith.constant dense<0.000000e+00> : vector<16x128xf32>
    %164 = tpu.matmul %162, %163, %cst_40 {dimension_numbers = #tpu.dot_dimension_numbers<[1], [0], [0], [1], [0, 0, 1, 1], [], []>} : vector<16x32xf32>, vector<32x128xf32>, vector<16x128xf32> -> vector<16x128xf32>
    %c0_41 = arith.constant 0 : index
    %c0_42 = arith.constant 0 : index
    %165 = vector.load %arg6[%c0_41, %c0_42] : memref<1x128xf32, #tpu.memory_space<vmem>>, vector<1x128xf32>
    %166 = vector.broadcast %165 : vector<1x128xf32> to vector<16x128xf32>
    %167 = arith.addf %164, %166 : vector<16x128xf32>
    %c0_43 = arith.constant 0 : index
    %c0_44 = arith.constant 0 : index
    %168 = vector.load %arg5[%c0_43, %c0_44] : memref<32x128xf32, #tpu.memory_space<vmem>>, vector<32x128xf32>
    %cst_45 = arith.constant 0.000000e+00 : f32
    %169 = vector.broadcast %cst_45 : f32 to vector<2x32xf32>
    %cst_46 = arith.constant 0.000000e+00 : f32
    %170 = vector.broadcast %cst_46 : f32 to vector<2x32xf32>
    %171 = vector.extract_strided_slice %167 {offsets = [0, 0], sizes = [2, 128], strides = [1, 1]} : vector<16x128xf32> to vector<2x128xf32>
    %cst_47 = arith.constant dense<0.000000e+00> : vector<2x128xf32>
    %172 = tpu.matmul %169, %168, %cst_47 {dimension_numbers = #tpu.dot_dimension_numbers<[1], [0], [0], [1], [0, 0, 1, 1], [], []>} : vector<2x32xf32>, vector<32x128xf32>, vector<2x128xf32> -> vector<2x128xf32>
    %173 = arith.addf %171, %172 : vector<2x128xf32>
    %174 = arith.negf %173 : vector<2x128xf32>
    %175 = math.exp %174 : vector<2x128xf32>
    %cst_48 = arith.constant 1.000000e+00 : f32
    %176 = vector.broadcast %cst_48 : f32 to vector<2x128xf32>
    %177 = arith.addf %176, %175 : vector<2x128xf32>
    %178 = arith.divf %176, %177 : vector<2x128xf32>
    %179 = math.tanh %173 : vector<2x128xf32>
    %180 = vector.extract_strided_slice %178 {offsets = [0, 0], sizes = [2, 32], strides = [1, 1]} : vector<2x128xf32> to vector<2x32xf32>
    %181 = vector.extract_strided_slice %178 {offsets = [0, 32], sizes = [2, 32], strides = [1, 1]} : vector<2x128xf32> to vector<2x32xf32>
    %182 = vector.extract_strided_slice %179 {offsets = [0, 64], sizes = [2, 32], strides = [1, 1]} : vector<2x128xf32> to vector<2x32xf32>
    %183 = vector.extract_strided_slice %178 {offsets = [0, 96], sizes = [2, 32], strides = [1, 1]} : vector<2x128xf32> to vector<2x32xf32>
    %184 = arith.mulf %181, %170 : vector<2x32xf32>
    %185 = arith.mulf %180, %182 : vector<2x32xf32>
    %186 = arith.addf %184, %185 : vector<2x32xf32>
    %187 = math.tanh %186 : vector<2x32xf32>
    %188 = arith.mulf %183, %187 : vector<2x32xf32>
    %189 = vector.extract_strided_slice %167 {offsets = [2, 0], sizes = [2, 128], strides = [1, 1]} : vector<16x128xf32> to vector<2x128xf32>
    %cst_49 = arith.constant dense<0.000000e+00> : vector<2x128xf32>
    %190 = tpu.matmul %188, %168, %cst_49 {dimension_numbers = #tpu.dot_dimension_numbers<[1], [0], [0], [1], [0, 0, 1, 1], [], []>} : vector<2x32xf32>, vector<32x128xf32>, vector<2x128xf32> -> vector<2x128xf32>
    %191 = arith.addf %189, %190 : vector<2x128xf32>
    %192 = arith.negf %191 : vector<2x128xf32>
    %193 = math.exp %192 : vector<2x128xf32>
    %cst_50 = arith.constant 1.000000e+00 : f32
    %194 = vector.broadcast %cst_50 : f32 to vector<2x128xf32>
    %195 = arith.addf %194, %193 : vector<2x128xf32>
    %196 = arith.divf %194, %195 : vector<2x128xf32>
    %197 = math.tanh %191 : vector<2x128xf32>
    %198 = vector.extract_strided_slice %196 {offsets = [0, 0], sizes = [2, 32], strides = [1, 1]} : vector<2x128xf32> to vector<2x32xf32>
    %199 = vector.extract_strided_slice %196 {offsets = [0, 32], sizes = [2, 32], strides = [1, 1]} : vector<2x128xf32> to vector<2x32xf32>
    %200 = vector.extract_strided_slice %197 {offsets = [0, 64], sizes = [2, 32], strides = [1, 1]} : vector<2x128xf32> to vector<2x32xf32>
    %201 = vector.extract_strided_slice %196 {offsets = [0, 96], sizes = [2, 32], strides = [1, 1]} : vector<2x128xf32> to vector<2x32xf32>
    %202 = arith.mulf %199, %186 : vector<2x32xf32>
    %203 = arith.mulf %198, %200 : vector<2x32xf32>
    %204 = arith.addf %202, %203 : vector<2x32xf32>
    %205 = math.tanh %204 : vector<2x32xf32>
    %206 = arith.mulf %201, %205 : vector<2x32xf32>
    %207 = vector.extract_strided_slice %167 {offsets = [4, 0], sizes = [2, 128], strides = [1, 1]} : vector<16x128xf32> to vector<2x128xf32>
    %cst_51 = arith.constant dense<0.000000e+00> : vector<2x128xf32>
    %208 = tpu.matmul %206, %168, %cst_51 {dimension_numbers = #tpu.dot_dimension_numbers<[1], [0], [0], [1], [0, 0, 1, 1], [], []>} : vector<2x32xf32>, vector<32x128xf32>, vector<2x128xf32> -> vector<2x128xf32>
    %209 = arith.addf %207, %208 : vector<2x128xf32>
    %210 = arith.negf %209 : vector<2x128xf32>
    %211 = math.exp %210 : vector<2x128xf32>
    %cst_52 = arith.constant 1.000000e+00 : f32
    %212 = vector.broadcast %cst_52 : f32 to vector<2x128xf32>
    %213 = arith.addf %212, %211 : vector<2x128xf32>
    %214 = arith.divf %212, %213 : vector<2x128xf32>
    %215 = math.tanh %209 : vector<2x128xf32>
    %216 = vector.extract_strided_slice %214 {offsets = [0, 0], sizes = [2, 32], strides = [1, 1]} : vector<2x128xf32> to vector<2x32xf32>
    %217 = vector.extract_strided_slice %214 {offsets = [0, 32], sizes = [2, 32], strides = [1, 1]} : vector<2x128xf32> to vector<2x32xf32>
    %218 = vector.extract_strided_slice %215 {offsets = [0, 64], sizes = [2, 32], strides = [1, 1]} : vector<2x128xf32> to vector<2x32xf32>
    %219 = vector.extract_strided_slice %214 {offsets = [0, 96], sizes = [2, 32], strides = [1, 1]} : vector<2x128xf32> to vector<2x32xf32>
    %220 = arith.mulf %217, %204 : vector<2x32xf32>
    %221 = arith.mulf %216, %218 : vector<2x32xf32>
    %222 = arith.addf %220, %221 : vector<2x32xf32>
    %223 = math.tanh %222 : vector<2x32xf32>
    %224 = arith.mulf %219, %223 : vector<2x32xf32>
    %225 = vector.extract_strided_slice %167 {offsets = [6, 0], sizes = [2, 128], strides = [1, 1]} : vector<16x128xf32> to vector<2x128xf32>
    %cst_53 = arith.constant dense<0.000000e+00> : vector<2x128xf32>
    %226 = tpu.matmul %224, %168, %cst_53 {dimension_numbers = #tpu.dot_dimension_numbers<[1], [0], [0], [1], [0, 0, 1, 1], [], []>} : vector<2x32xf32>, vector<32x128xf32>, vector<2x128xf32> -> vector<2x128xf32>
    %227 = arith.addf %225, %226 : vector<2x128xf32>
    %228 = arith.negf %227 : vector<2x128xf32>
    %229 = math.exp %228 : vector<2x128xf32>
    %cst_54 = arith.constant 1.000000e+00 : f32
    %230 = vector.broadcast %cst_54 : f32 to vector<2x128xf32>
    %231 = arith.addf %230, %229 : vector<2x128xf32>
    %232 = arith.divf %230, %231 : vector<2x128xf32>
    %233 = math.tanh %227 : vector<2x128xf32>
    %234 = vector.extract_strided_slice %232 {offsets = [0, 0], sizes = [2, 32], strides = [1, 1]} : vector<2x128xf32> to vector<2x32xf32>
    %235 = vector.extract_strided_slice %232 {offsets = [0, 32], sizes = [2, 32], strides = [1, 1]} : vector<2x128xf32> to vector<2x32xf32>
    %236 = vector.extract_strided_slice %233 {offsets = [0, 64], sizes = [2, 32], strides = [1, 1]} : vector<2x128xf32> to vector<2x32xf32>
    %237 = vector.extract_strided_slice %232 {offsets = [0, 96], sizes = [2, 32], strides = [1, 1]} : vector<2x128xf32> to vector<2x32xf32>
    %238 = arith.mulf %235, %222 : vector<2x32xf32>
    %239 = arith.mulf %234, %236 : vector<2x32xf32>
    %240 = arith.addf %238, %239 : vector<2x32xf32>
    %241 = math.tanh %240 : vector<2x32xf32>
    %242 = arith.mulf %237, %241 : vector<2x32xf32>
    %243 = vector.extract_strided_slice %167 {offsets = [8, 0], sizes = [2, 128], strides = [1, 1]} : vector<16x128xf32> to vector<2x128xf32>
    %cst_55 = arith.constant dense<0.000000e+00> : vector<2x128xf32>
    %244 = tpu.matmul %242, %168, %cst_55 {dimension_numbers = #tpu.dot_dimension_numbers<[1], [0], [0], [1], [0, 0, 1, 1], [], []>} : vector<2x32xf32>, vector<32x128xf32>, vector<2x128xf32> -> vector<2x128xf32>
    %245 = arith.addf %243, %244 : vector<2x128xf32>
    %246 = arith.negf %245 : vector<2x128xf32>
    %247 = math.exp %246 : vector<2x128xf32>
    %cst_56 = arith.constant 1.000000e+00 : f32
    %248 = vector.broadcast %cst_56 : f32 to vector<2x128xf32>
    %249 = arith.addf %248, %247 : vector<2x128xf32>
    %250 = arith.divf %248, %249 : vector<2x128xf32>
    %251 = math.tanh %245 : vector<2x128xf32>
    %252 = vector.extract_strided_slice %250 {offsets = [0, 0], sizes = [2, 32], strides = [1, 1]} : vector<2x128xf32> to vector<2x32xf32>
    %253 = vector.extract_strided_slice %250 {offsets = [0, 32], sizes = [2, 32], strides = [1, 1]} : vector<2x128xf32> to vector<2x32xf32>
    %254 = vector.extract_strided_slice %251 {offsets = [0, 64], sizes = [2, 32], strides = [1, 1]} : vector<2x128xf32> to vector<2x32xf32>
    %255 = vector.extract_strided_slice %250 {offsets = [0, 96], sizes = [2, 32], strides = [1, 1]} : vector<2x128xf32> to vector<2x32xf32>
    %256 = arith.mulf %253, %240 : vector<2x32xf32>
    %257 = arith.mulf %252, %254 : vector<2x32xf32>
    %258 = arith.addf %256, %257 : vector<2x32xf32>
    %259 = math.tanh %258 : vector<2x32xf32>
    %260 = arith.mulf %255, %259 : vector<2x32xf32>
    %261 = vector.extract_strided_slice %167 {offsets = [10, 0], sizes = [2, 128], strides = [1, 1]} : vector<16x128xf32> to vector<2x128xf32>
    %cst_57 = arith.constant dense<0.000000e+00> : vector<2x128xf32>
    %262 = tpu.matmul %260, %168, %cst_57 {dimension_numbers = #tpu.dot_dimension_numbers<[1], [0], [0], [1], [0, 0, 1, 1], [], []>} : vector<2x32xf32>, vector<32x128xf32>, vector<2x128xf32> -> vector<2x128xf32>
    %263 = arith.addf %261, %262 : vector<2x128xf32>
    %264 = arith.negf %263 : vector<2x128xf32>
    %265 = math.exp %264 : vector<2x128xf32>
    %cst_58 = arith.constant 1.000000e+00 : f32
    %266 = vector.broadcast %cst_58 : f32 to vector<2x128xf32>
    %267 = arith.addf %266, %265 : vector<2x128xf32>
    %268 = arith.divf %266, %267 : vector<2x128xf32>
    %269 = math.tanh %263 : vector<2x128xf32>
    %270 = vector.extract_strided_slice %268 {offsets = [0, 0], sizes = [2, 32], strides = [1, 1]} : vector<2x128xf32> to vector<2x32xf32>
    %271 = vector.extract_strided_slice %268 {offsets = [0, 32], sizes = [2, 32], strides = [1, 1]} : vector<2x128xf32> to vector<2x32xf32>
    %272 = vector.extract_strided_slice %269 {offsets = [0, 64], sizes = [2, 32], strides = [1, 1]} : vector<2x128xf32> to vector<2x32xf32>
    %273 = vector.extract_strided_slice %268 {offsets = [0, 96], sizes = [2, 32], strides = [1, 1]} : vector<2x128xf32> to vector<2x32xf32>
    %274 = arith.mulf %271, %258 : vector<2x32xf32>
    %275 = arith.mulf %270, %272 : vector<2x32xf32>
    %276 = arith.addf %274, %275 : vector<2x32xf32>
    %277 = math.tanh %276 : vector<2x32xf32>
    %278 = arith.mulf %273, %277 : vector<2x32xf32>
    %279 = vector.extract_strided_slice %167 {offsets = [12, 0], sizes = [2, 128], strides = [1, 1]} : vector<16x128xf32> to vector<2x128xf32>
    %cst_59 = arith.constant dense<0.000000e+00> : vector<2x128xf32>
    %280 = tpu.matmul %278, %168, %cst_59 {dimension_numbers = #tpu.dot_dimension_numbers<[1], [0], [0], [1], [0, 0, 1, 1], [], []>} : vector<2x32xf32>, vector<32x128xf32>, vector<2x128xf32> -> vector<2x128xf32>
    %281 = arith.addf %279, %280 : vector<2x128xf32>
    %282 = arith.negf %281 : vector<2x128xf32>
    %283 = math.exp %282 : vector<2x128xf32>
    %cst_60 = arith.constant 1.000000e+00 : f32
    %284 = vector.broadcast %cst_60 : f32 to vector<2x128xf32>
    %285 = arith.addf %284, %283 : vector<2x128xf32>
    %286 = arith.divf %284, %285 : vector<2x128xf32>
    %287 = math.tanh %281 : vector<2x128xf32>
    %288 = vector.extract_strided_slice %286 {offsets = [0, 0], sizes = [2, 32], strides = [1, 1]} : vector<2x128xf32> to vector<2x32xf32>
    %289 = vector.extract_strided_slice %286 {offsets = [0, 32], sizes = [2, 32], strides = [1, 1]} : vector<2x128xf32> to vector<2x32xf32>
    %290 = vector.extract_strided_slice %287 {offsets = [0, 64], sizes = [2, 32], strides = [1, 1]} : vector<2x128xf32> to vector<2x32xf32>
    %291 = vector.extract_strided_slice %286 {offsets = [0, 96], sizes = [2, 32], strides = [1, 1]} : vector<2x128xf32> to vector<2x32xf32>
    %292 = arith.mulf %289, %276 : vector<2x32xf32>
    %293 = arith.mulf %288, %290 : vector<2x32xf32>
    %294 = arith.addf %292, %293 : vector<2x32xf32>
    %295 = math.tanh %294 : vector<2x32xf32>
    %296 = arith.mulf %291, %295 : vector<2x32xf32>
    %297 = vector.extract_strided_slice %167 {offsets = [14, 0], sizes = [2, 128], strides = [1, 1]} : vector<16x128xf32> to vector<2x128xf32>
    %cst_61 = arith.constant dense<0.000000e+00> : vector<2x128xf32>
    %298 = tpu.matmul %296, %168, %cst_61 {dimension_numbers = #tpu.dot_dimension_numbers<[1], [0], [0], [1], [0, 0, 1, 1], [], []>} : vector<2x32xf32>, vector<32x128xf32>, vector<2x128xf32> -> vector<2x128xf32>
    %299 = arith.addf %297, %298 : vector<2x128xf32>
    %300 = arith.negf %299 : vector<2x128xf32>
    %301 = math.exp %300 : vector<2x128xf32>
    %cst_62 = arith.constant 1.000000e+00 : f32
    %302 = vector.broadcast %cst_62 : f32 to vector<2x128xf32>
    %303 = arith.addf %302, %301 : vector<2x128xf32>
    %304 = arith.divf %302, %303 : vector<2x128xf32>
    %305 = math.tanh %299 : vector<2x128xf32>
    %306 = vector.extract_strided_slice %304 {offsets = [0, 0], sizes = [2, 32], strides = [1, 1]} : vector<2x128xf32> to vector<2x32xf32>
    %307 = vector.extract_strided_slice %304 {offsets = [0, 32], sizes = [2, 32], strides = [1, 1]} : vector<2x128xf32> to vector<2x32xf32>
    %308 = vector.extract_strided_slice %305 {offsets = [0, 64], sizes = [2, 32], strides = [1, 1]} : vector<2x128xf32> to vector<2x32xf32>
    %309 = vector.extract_strided_slice %304 {offsets = [0, 96], sizes = [2, 32], strides = [1, 1]} : vector<2x128xf32> to vector<2x32xf32>
    %310 = arith.mulf %307, %294 : vector<2x32xf32>
    %311 = arith.mulf %306, %308 : vector<2x32xf32>
    %312 = arith.addf %310, %311 : vector<2x32xf32>
    %313 = math.tanh %312 : vector<2x32xf32>
    %314 = arith.mulf %309, %313 : vector<2x32xf32>
    %c2_63 = arith.constant 2 : index
    %c0_64 = arith.constant 0 : index
    %315 = vector.load %arg13[%c2_63, %c0_64] : memref<4x32xf32, #tpu.memory_space<vmem>>, vector<2x32xf32>
    tpu.vector_store %arg13[%c2_63, %c0_64], %314 {strides = array<i32>} : memref<4x32xf32, #tpu.memory_space<vmem>>, vector<2x32xf32>,
    %c0_65 = arith.constant 0 : index
    %c0_66 = arith.constant 0 : index
    %316 = vector.load %arg13[%c0_65, %c0_66] : memref<4x32xf32, #tpu.memory_space<vmem>>, vector<4x32xf32>
    %cst_67 = arith.constant 0.000000e+00 : f32
    %317 = vector.broadcast %cst_67 : f32 to vector<4x32xf32>
    %318 = arith.cmpf oge, %316, %317 : vector<4x32xf32>
    %cst_68 = arith.constant 0.00999999977 : f32
    %319 = vector.broadcast %cst_68 : f32 to vector<4x32xf32>
    %320 = arith.mulf %319, %316 : vector<4x32xf32>
    %321 = arith.select %318, %316, %320 : vector<4x32xi1>, vector<4x32xf32>
    %c0_69 = arith.constant 0 : index
    %c0_70 = arith.constant 0 : index
    %322 = vector.load %arg7[%c0_69, %c0_70] : memref<32x16xf32, #tpu.memory_space<vmem>>, vector<32x16xf32>
    %cst_71 = arith.constant dense<0.000000e+00> : vector<4x16xf32>
    %323 = tpu.matmul %321, %322, %cst_71 {dimension_numbers = #tpu.dot_dimension_numbers<[1], [0], [0], [1], [0, 0, 1, 1], [], []>} : vector<4x32xf32>, vector<32x16xf32>, vector<4x16xf32> -> vector<4x16xf32>
    %c0_72 = arith.constant 0 : index
    %c0_73 = arith.constant 0 : index
    %324 = vector.load %arg8[%c0_72, %c0_73] : memref<1x16xf32, #tpu.memory_space<vmem>>, vector<1x16xf32>
    %325 = vector.broadcast %324 : vector<1x16xf32> to vector<4x16xf32>
    %326 = arith.addf %323, %325 : vector<4x16xf32>
    %cst_74 = arith.constant 0.000000e+00 : f32
    %327 = vector.broadcast %cst_74 : f32 to vector<4x16xf32>
    %328 = arith.cmpf oge, %326, %327 : vector<4x16xf32>
    %cst_75 = arith.constant 0.00999999977 : f32
    %329 = vector.broadcast %cst_75 : f32 to vector<4x16xf32>
    %330 = arith.mulf %329, %326 : vector<4x16xf32>
    %331 = arith.select %328, %326, %330 : vector<4x16xi1>, vector<4x16xf32>
    %c0_76 = arith.constant 0 : index
    %c0_77 = arith.constant 0 : index
    %332 = vector.load %arg9[%c0_76, %c0_77] : memref<16x4xf32, #tpu.memory_space<vmem>>, vector<16x4xf32>
    %cst_78 = arith.constant dense<0.000000e+00> : vector<4x4xf32>
    %333 = tpu.matmul %331, %332, %cst_78 {dimension_numbers = #tpu.dot_dimension_numbers<[1], [0], [0], [1], [0, 0, 1, 1], [], []>} : vector<4x16xf32>, vector<16x4xf32>, vector<4x4xf32> -> vector<4x4xf32>
    %c0_79 = arith.constant 0 : index
    %c0_80 = arith.constant 0 : index
    %334 = vector.load %arg10[%c0_79, %c0_80] : memref<1x4xf32, #tpu.memory_space<vmem>>, vector<1x4xf32>
    %335 = vector.broadcast %334 : vector<1x4xf32> to vector<4x4xf32>
    %336 = arith.addf %333, %335 : vector<4x4xf32>
    %c0_81 = arith.constant 0 : index
    %c0_82 = arith.constant 0 : index
    %337 = vector.load %arg11[%c0_81, %c0_82] : memref<4x4xf32, #tpu.memory_space<vmem>>, vector<4x4xf32>
    tpu.vector_store %arg11[%c0_81, %c0_82], %336 {strides = array<i32>} : memref<4x4xf32, #tpu.memory_space<vmem>>, vector<4x4xf32>,
    return
  }
}

</mosaic_0001>

<llo_original>
// kernel: vanilla_lstm_forward.1
$region0: #{vanilla_lstm_forward.1}
  #allocation0 [shape = 'u32[]', space=smem, size = 0x4, offset = 0x4, fixed_abs, tag = 'smem constant byte address 0x4 - core index']
  #allocation1 [shape = 'u32[144,128]{1,0:T(1,128)}', space=vmem, size = 0x12000, scoped, tag = 'internal scratch']
  #allocation2 [shape = 'f32[16,32]{1,0:T(8,128)}', space=vmem, size = 0x2000, scoped, tag = 'scratch operand']
  #allocation3 [shape = 'f32[4,32]{1,0:T(4,128)}', space=vmem, size = 0x800, scoped, tag = 'scratch operand']
  %s0 = inlined_call_operand.vmem [shape: f32[16,16], index: 0, kind: input, shape index: {}]
  %s1 = inlined_call_operand.vmem [shape: f32[16,128], index: 1, kind: input, shape index: {}]
  %s2 = inlined_call_operand.vmem [shape: f32[32,128], index: 2, kind: input, shape index: {}]
  %s3 = inlined_call_operand.vmem [shape: f32[1,128], index: 3, kind: input, shape index: {}]
  %s4 = inlined_call_operand.vmem [shape: f32[32,128], index: 4, kind: input, shape index: {}]
  %s5 = inlined_call_operand.vmem [shape: f32[32,128], index: 5, kind: input, shape index: {}]
  %s6 = inlined_call_operand.vmem [shape: f32[1,128], index: 6, kind: input, shape index: {}]
  %s7 = inlined_call_operand.vmem [shape: f32[32,16], index: 7, kind: input, shape index: {}]
  %s8 = inlined_call_operand.hbm [shape: f32[1,16], index: 8, kind: input, shape index: {}]
  %s9 = inlined_call_operand.vmem [shape: f32[16,4], index: 9, kind: input, shape index: {}]
  %s10 = inlined_call_operand.hbm [shape: f32[1,4], index: 10, kind: input, shape index: {}]
  %s11 = inlined_call_operand.hbm [shape: f32[4,4], index: 11, kind: output, shape index: {}]
  %s12 = sld [smem:[#allocation0]]
  $region62: #{vanilla_lstm_forward.1} parent=0
    _
  %s14 = ssub.s32 1, %s12
  %s15 = scalar_select 0, %s14, %s12
  $region1: #{vanilla_lstm_forward.1} parent=0
    #allocation4 [shape = 'u8[512]{0}', space=vmem, size = 0x400, scoped, tag = 'input window, operand 8, single buffered']
    #allocation5 [shape = 's32[1]{0}', space=sflag, size = 0x4, scoped, tag = 'scoped memory for vanilla_lstm_forward.1']
    #allocation6 [shape = 's32[1]{0}', space=sflag, size = 0x4, scoped, tag = 'scoped memory for vanilla_lstm_forward.1']
    #allocation7 [shape = 'u8[512]{0}', space=vmem, size = 0x400, scoped, tag = 'input window, operand 10, single buffered']
    #allocation8 [shape = 's32[1]{0}', space=sflag, size = 0x4, scoped, tag = 'scoped memory for vanilla_lstm_forward.1']
    #allocation9 [shape = 'u8[2048]{0}', space=vmem, size = 0x800, scoped, tag = 'output window, operand 0, single buffered']
    %16 = vsyncpa [#allocation5], 0
    %17 = vsyncpa [#allocation8], 0
    %18 = vsyncpa [#allocation6], 0
    // Predicated region
    $region2: #{vanilla_lstm_forward.1} parent=1 // pred_check
      _
    $region3: #{vanilla_lstm_forward.1} parent=1 // pred_check_branch
      %20 = sbr.rel (0) target = $region5
    $region4: #{vanilla_lstm_forward.1} parent=1 // pred_region
      _
    $region5: #{vanilla_lstm_forward.1} parent=1 // pred_fallthru
      _
    // Predicated region
    $region6: #{vanilla_lstm_forward.1} parent=1 // pred_check
      _
    $region7: #{vanilla_lstm_forward.1} parent=1 // pred_check_branch
      %22 = sbr.rel (0) target = $region9
    $region8: #{vanilla_lstm_forward.1} parent=1 // pred_region
      _
    $region9: #{vanilla_lstm_forward.1} parent=1 // pred_fallthru
      _
    // Predicated region
    $region10: #{vanilla_lstm_forward.1} parent=1 // pred_check
      _
    $region11: #{vanilla_lstm_forward.1} parent=1 // pred_check_branch
      %24 = sbr.rel (0) target = $region13
    $region12: #{vanilla_lstm_forward.1} parent=1 // pred_region
      _
    $region13: #{vanilla_lstm_forward.1} parent=1 // pred_fallthru
      _
    // Predicated region
    $region14: #{vanilla_lstm_forward.1} parent=1 // pred_check
      _
    $region15: #{vanilla_lstm_forward.1} parent=1 // pred_check_branch
      %26 = sbr.rel (0) target = $region17
    $region16: #{vanilla_lstm_forward.1} parent=1 // pred_region
      _
    $region17: #{vanilla_lstm_forward.1} parent=1 // pred_fallthru
      _
    // Predicated region
    $region18: #{vanilla_lstm_forward.1} parent=1 // pred_check
      _
    $region19: #{vanilla_lstm_forward.1} parent=1 // pred_check_branch
      %28 = sbr.rel (0) target = $region21
    $region20: #{vanilla_lstm_forward.1} parent=1 // pred_region
      _
    $region21: #{vanilla_lstm_forward.1} parent=1 // pred_fallthru
      _
    // Predicated region
    $region22: #{vanilla_lstm_forward.1} parent=1 // pred_check
      _
    $region23: #{vanilla_lstm_forward.1} parent=1 // pred_check_branch
      %30 = sbr.rel (0) target = $region25
    $region24: #{vanilla_lstm_forward.1} parent=1 // pred_region
      _
    $region25: #{vanilla_lstm_forward.1} parent=1 // pred_fallthru
      _
    // Predicated region
    $region26: #{vanilla_lstm_forward.1} parent=1 // pred_check
      _
    $region27: #{vanilla_lstm_forward.1} parent=1 // pred_check_branch
      %32 = sbr.rel (0) target = $region29
    $region28: #{vanilla_lstm_forward.1} parent=1 // pred_region
      _
    $region29: #{vanilla_lstm_forward.1} parent=1 // pred_fallthru
      _
    // Predicated region
    $region30: #{vanilla_lstm_forward.1} parent=1 // pred_check
      _
    $region31: #{vanilla_lstm_forward.1} parent=1 // pred_check_branch
      %34 = sbr.rel (0) target = $region33
    $region32: #{vanilla_lstm_forward.1} parent=1 // pred_region
      _
    $region33: #{vanilla_lstm_forward.1} parent=1 // pred_fallthru
      _
    // Predicated region
    $region34: #{vanilla_lstm_forward.1} parent=1 // pred_check
      _
    $region35: #{vanilla_lstm_forward.1} parent=1 // pred_check_branch
      %36 = sbr.rel (0) target = $region37
    $region36: #{vanilla_lstm_forward.1} parent=1 // pred_region
      %s38 = ssub.s32 16, 16
      %39 = vsyncadd [#allocation5], %s38
      %s41 = sshll.u32 [#allocation4], 4
      %s42 = int_to_ptr.vmem [resolvable:$true] %s41
      %44 = dma.hbm_to_vmem [thread:$0]  %s8, 16, %s42, [#allocation5]
    $region37: #{vanilla_lstm_forward.1} parent=1 // pred_fallthru
      _
    // Predicated region
    $region38: #{vanilla_lstm_forward.1} parent=1 // pred_check
      _
    $region39: #{vanilla_lstm_forward.1} parent=1 // pred_check_branch
      %46 = sbr.rel (0) target = $region41
    $region40: #{vanilla_lstm_forward.1} parent=1 // pred_region
      _
    $region41: #{vanilla_lstm_forward.1} parent=1 // pred_fallthru
      _
    // Predicated region
    $region42: #{vanilla_lstm_forward.1} parent=1 // pred_check
      _
    $region43: #{vanilla_lstm_forward.1} parent=1 // pred_check_branch
      %48 = sbr.rel (0) target = $region45
    $region44: #{vanilla_lstm_forward.1} parent=1 // pred_region
      %s50 = ssub.s32 16, 16
      %51 = vsyncadd [#allocation8], %s50
      %s53 = sshll.u32 [#allocation7], 4
      %s54 = int_to_ptr.vmem [resolvable:$true] %s53
      %56 = dma.hbm_to_vmem [thread:$0]  %s10, 16, %s54, [#allocation8]
    $region45: #{vanilla_lstm_forward.1} parent=1 // pred_fallthru
      _
    // Predicated region
    $region46: #{vanilla_lstm_forward.1} parent=1 // pred_check
      _
    $region47: #{vanilla_lstm_forward.1} parent=1 // pred_check_branch
      %58 = sbr.rel (0) target = $region49
    $region48: #{vanilla_lstm_forward.1} parent=1 // pred_region
      %59 = dma.done [#allocation5], 16
    $region49: #{vanilla_lstm_forward.1} parent=1 // pred_fallthru
      _
    // Predicated region
    $region50: #{vanilla_lstm_forward.1} parent=1 // pred_check
      _
    $region51: #{vanilla_lstm_forward.1} parent=1 // pred_check_branch
      %61 = sbr.rel (0) target = $region53
    $region52: #{vanilla_lstm_forward.1} parent=1 // pred_region
      %62 = dma.done [#allocation8], 16
    $region53: #{vanilla_lstm_forward.1} parent=1 // pred_fallthru
      _
    %v63 = vld [vmem:[%s0] sm:$0xff]
    %v64 = vld [vmem:[%s0 + $0x8] sm:$0xff]
    %v65 = vld [vmem:[%s1] sm:$0xff]
    %v66 = vld [vmem:[%s1 + $0x8] sm:$0xff]
    %v67 = vld [vmem:[%s3] sm:$0x1]
    %v69 = vlaneseq
    %v70 = vshrl.u32 %v69, 7
    %v71 = vsub.s32 0, %v70
    %v72 = vrot.slane %v67, %v71
    %vm74 = vcmask 130048
    %v76 = vsel %vm74, %v63, 0
    %v79 = vsel %vm74, %v64, 0
    %81 = vmatprep.subr.mxu0 0.0
    %82 = vmatpush1.msra.mxu0 %v65
    %83 = vmatprep.subr.mxu0 0.0
    %84 = vmatpush1.msra.mxu0 %v66
    %85 = vmatprep.subr.mxu0 0.0
    %86 = vmatpush1.msra.mxu0 0.0
    %87 = vmatprep.subr.mxu0 0.0
    %88 = vmatpush1.msra.mxu0 0.0
    %89 = vmatprep.subr.mxu0 0.0
    %90 = vmatpush1.msra.mxu0 0.0
    %91 = vmatprep.subr.mxu0 0.0
    %92 = vmatpush1.msra.mxu0 0.0
    %93 = vmatprep.subr.mxu0 0.0
    %94 = vmatpush1.msra.mxu0 0.0
    %95 = vmatprep.subr.mxu0 0.0
    %96 = vmatpush1.msra.mxu0 0.0
    %97 = vmatprep.subr.mxu0 0.0
    %98 = vmatpush1.msra.mxu0 0.0
    %99 = vmatprep.subr.mxu0 0.0
    %100 = vmatpush1.msra.mxu0 0.0
    %101 = vmatprep.subr.mxu0 0.0
    %102 = vmatpush1.msra.mxu0 0.0
    %103 = vmatprep.subr.mxu0 0.0
    %104 = vmatpush1.msra.mxu0 0.0
    %105 = vmatprep.subr.mxu0 0.0
    %106 = vmatpush1.msra.mxu0 0.0
    %107 = vmatprep.subr.mxu0 0.0
    %108 = vmatpush1.msra.mxu0 0.0
    %109 = vmatprep.subr.mxu0 0.0
    %110 = vmatpush1.msra.mxu0 0.0
    %111 = vmatprep.subr.mxu0 0.0
    %112 = vmatpush1.msra.mxu0 0.0
    %113 = vmatprep.subr.mxu0 0.0
    %114 = vmatpush1.msra.mxu0 0.0
    %115 = vmatprep.subr.mxu0 0.0
    %116 = vmatpush1.msra.mxu0 0.0
    %117 = vmatprep.subr.mxu0 0.0
    %118 = vmatpush1.msra.mxu0 0.0
    %119 = vmatprep.subr.mxu0 0.0
    %120 = vmatpush1.msra.mxu0 0.0
    %121 = vmatprep.subr.mxu0 0.0
    %122 = vmatpush1.msra.mxu0 0.0
    %123 = vmatprep.subr.mxu0 0.0
    %124 = vmatpush1.msra.mxu0 0.0
    %125 = vmatprep.subr.mxu0 0.0
    %126 = vmatpush1.msra.mxu0 0.0
    %127 = vmatprep.subr.mxu0 0.0
    %128 = vmatpush1.msra.mxu0 0.0
    %129 = vmatprep.subr.mxu0 0.0
    %130 = vmatpush1.msra.mxu0 0.0
    %131 = vmatprep.subr.mxu0 0.0
    %132 = vmatpush1.msra.mxu0 0.0
    %133 = vmatprep.subr.mxu0 0.0
    %134 = vmatpush1.msra.mxu0 0.0
    %135 = vmatprep.subr.mxu0 0.0
    %136 = vmatpush1.msra.mxu0 0.0
    %137 = vmatprep.subr.mxu0 0.0
    %138 = vmatpush1.msra.mxu0 0.0
    %139 = vmatprep.subr.mxu0 0.0
    %140 = vmatpush1.msra.mxu0 0.0
    %141 = vmatprep.subr.mxu0 0.0
    %142 = vmatpush1.msra.mxu0 0.0
    %143 = vmatprep.subr.mxu0 0.0
    %144 = vmatpush1.msra.mxu0 0.0
    %145 = vmatprep.mubr.f32.mxu0 0.0
    %146 = vmatmul.mubr.f32.gmra.mrb[0].mxu0 %v76
    %v147 = vpop.f32.mrb[0].mxu0
    %v148 = vadd.f32 %v72, %v147
    %v149 = vpop.f32.mrb[0].mxu0
    %150 = vmatprep.mubr.f32.mxu0 0.0
    %151 = vmatmul.mubr.f32.gmra.mrb[0].mxu0 %v79
    %v152 = vpop.f32.mrb[0].mxu0
    %v153 = vadd.f32 %v72, %v152
    %v154 = vpop.f32.mrb[0].mxu0
    %155 = vdwg.mxu0
    %v156 = vld [vmem:[%s2] sm:$0xff]
    %v157 = vld [vmem:[%s2 + $0x8] sm:$0xff]
    %v158 = vld [vmem:[%s2 + $0x10] sm:$0xff]
    %v159 = vld [vmem:[%s2 + $0x18] sm:$0xff]
    %vm160 = vcmask 261120
    %v162 = vsel %vm160, 0.0, 0
    %164 = vmatprep.subr.mxu0 0.0
    %165 = vmatpush1.msra.mxu0 %v156
    %166 = vmatprep.subr.mxu0 0.0
    %167 = vmatpush1.msra.mxu0 %v157
    %168 = vmatprep.subr.mxu0 0.0
    %169 = vmatpush1.msra.mxu0 %v158
    %170 = vmatprep.subr.mxu0 0.0
    %171 = vmatpush1.msra.mxu0 %v159
    %172 = vmatprep.subr.mxu0 0.0
    %173 = vmatpush1.msra.mxu0 0.0
    %174 = vmatprep.subr.mxu0 0.0
    %175 = vmatpush1.msra.mxu0 0.0
    %176 = vmatprep.subr.mxu0 0.0
    %177 = vmatpush1.msra.mxu0 0.0
    %178 = vmatprep.subr.mxu0 0.0
    %179 = vmatpush1.msra.mxu0 0.0
    %180 = vmatprep.subr.mxu0 0.0
    %181 = vmatpush1.msra.mxu0 0.0
    %182 = vmatprep.subr.mxu0 0.0
    %183 = vmatpush1.msra.mxu0 0.0
    %184 = vmatprep.subr.mxu0 0.0
    %185 = vmatpush1.msra.mxu0 0.0
    %186 = vmatprep.subr.mxu0 0.0
    %187 = vmatpush1.msra.mxu0 0.0
    %188 = vmatprep.subr.mxu0 0.0
    %189 = vmatpush1.msra.mxu0 0.0
    %190 = vmatprep.subr.mxu0 0.0
    %191 = vmatpush1.msra.mxu0 0.0
    %192 = vmatprep.subr.mxu0 0.0
    %193 = vmatpush1.msra.mxu0 0.0
    %194 = vmatprep.subr.mxu0 0.0
    %195 = vmatpush1.msra.mxu0 0.0
    %196 = vmatprep.subr.mxu0 0.0
    %197 = vmatpush1.msra.mxu0 0.0
    %198 = vmatprep.subr.mxu0 0.0
    %199 = vmatpush1.msra.mxu0 0.0
    %200 = vmatprep.subr.mxu0 0.0
    %201 = vmatpush1.msra.mxu0 0.0
    %202 = vmatprep.subr.mxu0 0.0
    %203 = vmatpush1.msra.mxu0 0.0
    %204 = vmatprep.subr.mxu0 0.0
    %205 = vmatpush1.msra.mxu0 0.0
    %206 = vmatprep.subr.mxu0 0.0
    %207 = vmatpush1.msra.mxu0 0.0
    %208 = vmatprep.subr.mxu0 0.0
    %209 = vmatpush1.msra.mxu0 0.0
    %210 = vmatprep.subr.mxu0 0.0
    %211 = vmatpush1.msra.mxu0 0.0
    %212 = vmatprep.subr.mxu0 0.0
    %213 = vmatpush1.msra.mxu0 0.0
    %214 = vmatprep.subr.mxu0 0.0
    %215 = vmatpush1.msra.mxu0 0.0
    %216 = vmatprep.subr.mxu0 0.0
    %217 = vmatpush1.msra.mxu0 0.0
    %218 = vmatprep.subr.mxu0 0.0
    %219 = vmatpush1.msra.mxu0 0.0
    %220 = vmatprep.subr.mxu0 0.0
    %221 = vmatpush1.msra.mxu0 0.0
    %222 = vmatprep.subr.mxu0 0.0
    %223 = vmatpush1.msra.mxu0 0.0
    %224 = vmatprep.subr.mxu0 0.0
    %225 = vmatpush1.msra.mxu0 0.0
    %226 = vmatprep.subr.mxu0 0.0
    %227 = vmatpush1.msra.mxu0 0.0
    %228 = vmatprep.mubr.f32.mxu0 0.0
    %229 = vmatmul.mubr.f32.gmra.mrb[0].mxu0 %v162
    %v230 = vpop.f32.mrb[0].mxu0
    %v231 = vadd.f32 0.0, %v230
    %v232 = vpop.f32.mrb[0].mxu0
    %233 = vdwg.mxu0
    %v234 = vadd.f32 %v148, %v231
    %v235 = vxor.u32 %v234, 2147483648
    %v236 = vmul.f32 %v235, 1.442695
    %v237 = vpow.pop %v236
    %v238 = vadd.f32 %v237, 1.0
    %v239 = vrcp.pop %v238
    %v240 = vmul.f32 1.0, %v239
    %v241 = vtanh.pop %v234
    %v242 = vmul.f32 %v240, 0.0
    %244 = vrot.lane.b32.xlu0 %v241, 64
    %v245 = vpop.permute.xlu0 %244
    %v247 = vmul.f32 %v240, %v245
    %249 = vrot.lane.b32.xlu0 %v247, 32
    %v250 = vpop.permute.xlu0 %249
    %v252 = vadd.f32 %v242, %v250
    %v253 = vtanh.pop %v252
    %255 = vrot.lane.b32.xlu0 %v253, 64
    %v256 = vpop.permute.xlu0 %255
    %v258 = vmul.f32 %v240, %v256
    %260 = vrot.lane.b32.xlu0 %v258, 32
    %v261 = vpop.permute.xlu0 %260
    %vm263 = vcmask 254976
    %264 = vst.msk [vmem:[#allocation2] sm:$0x3] %vm263, %v261
    %v265 = vsel %vm160, %v261, 0
    %267 = vmatprep.subr.mxu0 0.0
    %268 = vmatpush1.msra.mxu0 %v156
    %269 = vmatprep.subr.mxu0 0.0
    %270 = vmatpush1.msra.mxu0 %v157
    %271 = vmatprep.subr.mxu0 0.0
    %272 = vmatpush1.msra.mxu0 %v158
    %273 = vmatprep.subr.mxu0 0.0
    %274 = vmatpush1.msra.mxu0 %v159
    %275 = vmatprep.subr.mxu0 0.0
    %276 = vmatpush1.msra.mxu0 0.0
    %277 = vmatprep.subr.mxu0 0.0
    %278 = vmatpush1.msra.mxu0 0.0
    %279 = vmatprep.subr.mxu0 0.0
    %280 = vmatpush1.msra.mxu0 0.0
    %281 = vmatprep.subr.mxu0 0.0
    %282 = vmatpush1.msra.mxu0 0.0
    %283 = vmatprep.subr.mxu0 0.0
    %284 = vmatpush1.msra.mxu0 0.0
    %285 = vmatprep.subr.mxu0 0.0
    %286 = vmatpush1.msra.mxu0 0.0
    %287 = vmatprep.subr.mxu0 0.0
    %288 = vmatpush1.msra.mxu0 0.0
    %289 = vmatprep.subr.mxu0 0.0
    %290 = vmatpush1.msra.mxu0 0.0
    %291 = vmatprep.subr.mxu0 0.0
    %292 = vmatpush1.msra.mxu0 0.0
    %293 = vmatprep.subr.mxu0 0.0
    %294 = vmatpush1.msra.mxu0 0.0
    %295 = vmatprep.subr.mxu0 0.0
    %296 = vmatpush1.msra.mxu0 0.0
    %297 = vmatprep.subr.mxu0 0.0
    %298 = vmatpush1.msra.mxu0 0.0
    %299 = vmatprep.subr.mxu0 0.0
    %300 = vmatpush1.msra.mxu0 0.0
    %301 = vmatprep.subr.mxu0 0.0
    %302 = vmatpush1.msra.mxu0 0.0
    %303 = vmatprep.subr.mxu0 0.0
    %304 = vmatpush1.msra.mxu0 0.0
    %305 = vmatprep.subr.mxu0 0.0
    %306 = vmatpush1.msra.mxu0 0.0
    %307 = vmatprep.subr.mxu0 0.0
    %308 = vmatpush1.msra.mxu0 0.0
    %309 = vmatprep.subr.mxu0 0.0
    %310 = vmatpush1.msra.mxu0 0.0
    %311 = vmatprep.subr.mxu0 0.0
    %312 = vmatpush1.msra.mxu0 0.0
    %313 = vmatprep.subr.mxu0 0.0
    %314 = vmatpush1.msra.mxu0 0.0
    %315 = vmatprep.subr.mxu0 0.0
    %316 = vmatpush1.msra.mxu0 0.0
    %317 = vmatprep.subr.mxu0 0.0
    %318 = vmatpush1.msra.mxu0 0.0
    %319 = vmatprep.subr.mxu0 0.0
    %320 = vmatpush1.msra.mxu0 0.0
    %321 = vmatprep.subr.mxu0 0.0
    %322 = vmatpush1.msra.mxu0 0.0
    %323 = vmatprep.subr.mxu0 0.0
    %324 = vmatpush1.msra.mxu0 0.0
    %325 = vmatprep.subr.mxu0 0.0
    %326 = vmatpush1.msra.mxu0 0.0
    %327 = vmatprep.subr.mxu0 0.0
    %328 = vmatpush1.msra.mxu0 0.0
    %329 = vmatprep.subr.mxu0 0.0
    %330 = vmatpush1.msra.mxu0 0.0
    %331 = vmatprep.mubr.f32.mxu0 0.0
    %332 = vmatmul.mubr.f32.gmra.mrb[0].mxu0 %v265
    %v333 = vpop.f32.mrb[0].mxu0
    %v334 = vadd.f32 0.0, %v333
    %v335 = vpop.f32.mrb[0].mxu0
    %336 = vdwg.mxu0
    %v338 = vrot.slane %v334, 6
    %v340 = vadd.f32 %v148, %v338
    %v341 = vxor.u32 %v340, 2147483648
    %v342 = vmul.f32 %v341, 1.442695
    %v343 = vpow.pop %v342
    %v344 = vadd.f32 %v343, 1.0
    %v345 = vrcp.pop %v344
    %v346 = vmul.f32 1.0, %v345
    %v347 = vtanh.pop %v340
    %v349 = vrot.slane %v252, 6
    %v351 = vmul.f32 %v346, %v349
    %353 = vrot.lane.b32.xlu0 %v347, 64
    %v354 = vpop.permute.xlu0 %353
    %v356 = vmul.f32 %v346, %v354
    %358 = vrot.lane.b32.xlu0 %v356, 32
    %v359 = vpop.permute.xlu0 %358
    %v361 = vadd.f32 %v351, %v359
    %v362 = vtanh.pop %v361
    %364 = vrot.lane.b32.xlu0 %v362, 64
    %v365 = vpop.permute.xlu0 %364
    %v367 = vmul.f32 %v346, %v365
    %369 = vrot.lane.b32.xlu0 %v367, 32
    %v370 = vpop.permute.xlu0 %369
    %vm372 = vcmask 257026
    %373 = vst.msk [vmem:[#allocation2] sm:$0xc] %vm372, %v370
    %v374 = vrot.slane %v367, 2
    %375 = vrot.lane.b32.xlu0 %v374, 32
    %v376 = vpop.permute.xlu0 %375
    %v377 = vsel %vm160, %v376, 0
    %379 = vmatprep.subr.mxu0 0.0
    %380 = vmatpush1.msra.mxu0 %v156
    %381 = vmatprep.subr.mxu0 0.0
    %382 = vmatpush1.msra.mxu0 %v157
    %383 = vmatprep.subr.mxu0 0.0
    %384 = vmatpush1.msra.mxu0 %v158
    %385 = vmatprep.subr.mxu0 0.0
    %386 = vmatpush1.msra.mxu0 %v159
    %387 = vmatprep.subr.mxu0 0.0
    %388 = vmatpush1.msra.mxu0 0.0
    %389 = vmatprep.subr.mxu0 0.0
    %390 = vmatpush1.msra.mxu0 0.0
    %391 = vmatprep.subr.mxu0 0.0
    %392 = vmatpush1.msra.mxu0 0.0
    %393 = vmatprep.subr.mxu0 0.0
    %394 = vmatpush1.msra.mxu0 0.0
    %395 = vmatprep.subr.mxu0 0.0
    %396 = vmatpush1.msra.mxu0 0.0
    %397 = vmatprep.subr.mxu0 0.0
    %398 = vmatpush1.msra.mxu0 0.0
    %399 = vmatprep.subr.mxu0 0.0
    %400 = vmatpush1.msra.mxu0 0.0
    %401 = vmatprep.subr.mxu0 0.0
    %402 = vmatpush1.msra.mxu0 0.0
    %403 = vmatprep.subr.mxu0 0.0
    %404 = vmatpush1.msra.mxu0 0.0
    %405 = vmatprep.subr.mxu0 0.0
    %406 = vmatpush1.msra.mxu0 0.0
    %407 = vmatprep.subr.mxu0 0.0
    %408 = vmatpush1.msra.mxu0 0.0
    %409 = vmatprep.subr.mxu0 0.0
    %410 = vmatpush1.msra.mxu0 0.0
    %411 = vmatprep.subr.mxu0 0.0
    %412 = vmatpush1.msra.mxu0 0.0
    %413 = vmatprep.subr.mxu0 0.0
    %414 = vmatpush1.msra.mxu0 0.0
    %415 = vmatprep.subr.mxu0 0.0
    %416 = vmatpush1.msra.mxu0 0.0
    %417 = vmatprep.subr.mxu0 0.0
    %418 = vmatpush1.msra.mxu0 0.0
    %419 = vmatprep.subr.mxu0 0.0
    %420 = vmatpush1.msra.mxu0 0.0
    %421 = vmatprep.subr.mxu0 0.0
    %422 = vmatpush1.msra.mxu0 0.0
    %423 = vmatprep.subr.mxu0 0.0
    %424 = vmatpush1.msra.mxu0 0.0
    %425 = vmatprep.subr.mxu0 0.0
    %426 = vmatpush1.msra.mxu0 0.0
    %427 = vmatprep.subr.mxu0 0.0
    %428 = vmatpush1.msra.mxu0 0.0
    %429 = vmatprep.subr.mxu0 0.0
    %430 = vmatpush1.msra.mxu0 0.0
    %431 = vmatprep.subr.mxu0 0.0
    %432 = vmatpush1.msra.mxu0 0.0
    %433 = vmatprep.subr.mxu0 0.0
    %434 = vmatpush1.msra.mxu0 0.0
    %435 = vmatprep.subr.mxu0 0.0
    %436 = vmatpush1.msra.mxu0 0.0
    %437 = vmatprep.subr.mxu0 0.0
    %438 = vmatpush1.msra.mxu0 0.0
    %439 = vmatprep.subr.mxu0 0.0
    %440 = vmatpush1.msra.mxu0 0.0
    %441 = vmatprep.subr.mxu0 0.0
    %442 = vmatpush1.msra.mxu0 0.0
    %443 = vmatprep.mubr.f32.mxu0 0.0
    %444 = vmatmul.mubr.f32.gmra.mrb[0].mxu0 %v377
    %v445 = vpop.f32.mrb[0].mxu0
    %v446 = vadd.f32 0.0, %v445
    %v447 = vpop.f32.mrb[0].mxu0
    %448 = vdwg.mxu0
    %v450 = vrot.slane %v446, 4
    %v452 = vadd.f32 %v148, %v450
    %v453 = vxor.u32 %v452, 2147483648
    %v454 = vmul.f32 %v453, 1.442695
    %v455 = vpow.pop %v454
    %v456 = vadd.f32 %v455, 1.0
    %v457 = vrcp.pop %v456
    %v458 = vmul.f32 1.0, %v457
    %v459 = vtanh.pop %v452
    %v461 = vrot.slane %v361, 6
    %v463 = vmul.f32 %v458, %v461
    %465 = vrot.lane.b32.xlu0 %v459, 64
    %v466 = vpop.permute.xlu0 %465
    %v468 = vmul.f32 %v458, %v466
    %470 = vrot.lane.b32.xlu0 %v468, 32
    %v471 = vpop.permute.xlu0 %470
    %v473 = vadd.f32 %v463, %v471
    %v474 = vtanh.pop %v473
    %476 = vrot.lane.b32.xlu0 %v474, 64
    %v477 = vpop.permute.xlu0 %476
    %v479 = vmul.f32 %v458, %v477
    %481 = vrot.lane.b32.xlu0 %v479, 32
    %v482 = vpop.permute.xlu0 %481
    %vm484 = vcmask 259076
    %485 = vst.msk [vmem:[#allocation2] sm:$0x30] %vm484, %v482
    %v486 = vrot.slane %v479, 4
    %487 = vrot.lane.b32.xlu0 %v486, 32
    %v488 = vpop.permute.xlu0 %487
    %v489 = vsel %vm160, %v488, 0
    %491 = vmatprep.subr.mxu0 0.0
    %492 = vmatpush1.msra.mxu0 %v156
    %493 = vmatprep.subr.mxu0 0.0
    %494 = vmatpush1.msra.mxu0 %v157
    %495 = vmatprep.subr.mxu0 0.0
    %496 = vmatpush1.msra.mxu0 %v158
    %497 = vmatprep.subr.mxu0 0.0
    %498 = vmatpush1.msra.mxu0 %v159
    %499 = vmatprep.subr.mxu0 0.0
    %500 = vmatpush1.msra.mxu0 0.0
    %501 = vmatprep.subr.mxu0 0.0
    %502 = vmatpush1.msra.mxu0 0.0
    %503 = vmatprep.subr.mxu0 0.0
    %504 = vmatpush1.msra.mxu0 0.0
    %505 = vmatprep.subr.mxu0 0.0
    %506 = vmatpush1.msra.mxu0 0.0
    %507 = vmatprep.subr.mxu0 0.0
    %508 = vmatpush1.msra.mxu0 0.0
    %509 = vmatprep.subr.mxu0 0.0
    %510 = vmatpush1.msra.mxu0 0.0
    %511 = vmatprep.subr.mxu0 0.0
    %512 = vmatpush1.msra.mxu0 0.0
    %513 = vmatprep.subr.mxu0 0.0
    %514 = vmatpush1.msra.mxu0 0.0
    %515 = vmatprep.subr.mxu0 0.0
    %516 = vmatpush1.msra.mxu0 0.0
    %517 = vmatprep.subr.mxu0 0.0
    %518 = vmatpush1.msra.mxu0 0.0
    %519 = vmatprep.subr.mxu0 0.0
    %520 = vmatpush1.msra.mxu0 0.0
    %521 = vmatprep.subr.mxu0 0.0
    %522 = vmatpush1.msra.mxu0 0.0
    %523 = vmatprep.subr.mxu0 0.0
    %524 = vmatpush1.msra.mxu0 0.0
    %525 = vmatprep.subr.mxu0 0.0
    %526 = vmatpush1.msra.mxu0 0.0
    %527 = vmatprep.subr.mxu0 0.0
    %528 = vmatpush1.msra.mxu0 0.0
    %529 = vmatprep.subr.mxu0 0.0
    %530 = vmatpush1.msra.mxu0 0.0
    %531 = vmatprep.subr.mxu0 0.0
    %532 = vmatpush1.msra.mxu0 0.0
    %533 = vmatprep.subr.mxu0 0.0
    %534 = vmatpush1.msra.mxu0 0.0
    %535 = vmatprep.subr.mxu0 0.0
    %536 = vmatpush1.msra.mxu0 0.0
    %537 = vmatprep.subr.mxu0 0.0
    %538 = vmatpush1.msra.mxu0 0.0
    %539 = vmatprep.subr.mxu0 0.0
    %540 = vmatpush1.msra.mxu0 0.0
    %541 = vmatprep.subr.mxu0 0.0
    %542 = vmatpush1.msra.mxu0 0.0
    %543 = vmatprep.subr.mxu0 0.0
    %544 = vmatpush1.msra.mxu0 0.0
    %545 = vmatprep.subr.mxu0 0.0
    %546 = vmatpush1.msra.mxu0 0.0
    %547 = vmatprep.subr.mxu0 0.0
    %548 = vmatpush1.msra.mxu0 0.0
    %549 = vmatprep.subr.mxu0 0.0
    %550 = vmatpush1.msra.mxu0 0.0
    %551 = vmatprep.subr.mxu0 0.0
    %552 = vmatpush1.msra.mxu0 0.0
    %553 = vmatprep.subr.mxu0 0.0
    %554 = vmatpush1.msra.mxu0 0.0
    %555 = vmatprep.mubr.f32.mxu0 0.0
    %556 = vmatmul.mubr.f32.gmra.mrb[0].mxu0 %v489
    %v557 = vpop.f32.mrb[0].mxu0
    %v558 = vadd.f32 0.0, %v557
    %v559 = vpop.f32.mrb[0].mxu0
    %560 = vdwg.mxu0
    %v562 = vrot.slane %v558, 2
    %v564 = vadd.f32 %v148, %v562
    %v565 = vxor.u32 %v564, 2147483648
    %v566 = vmul.f32 %v565, 1.442695
    %v567 = vpow.pop %v566
    %v568 = vadd.f32 %v567, 1.0
    %v569 = vrcp.pop %v568
    %v570 = vmul.f32 1.0, %v569
    %v571 = vtanh.pop %v564
    %v573 = vrot.slane %v473, 6
    %v575 = vmul.f32 %v570, %v573
    %577 = vrot.lane.b32.xlu0 %v571, 64
    %v578 = vpop.permute.xlu0 %577
    %v580 = vmul.f32 %v570, %v578
    %582 = vrot.lane.b32.xlu0 %v580, 32
    %v583 = vpop.permute.xlu0 %582
    %v585 = vadd.f32 %v575, %v583
    %v586 = vtanh.pop %v585
    %588 = vrot.lane.b32.xlu0 %v586, 64
    %v589 = vpop.permute.xlu0 %588
    %v591 = vmul.f32 %v570, %v589
    %593 = vrot.lane.b32.xlu0 %v591, 32
    %v594 = vpop.permute.xlu0 %593
    %vm596 = vcmask 261126
    %597 = vst.msk [vmem:[#allocation2] sm:$0xc0] %vm596, %v594
    %v598 = vrot.slane %v591, 6
    %599 = vrot.lane.b32.xlu0 %v598, 32
    %v600 = vpop.permute.xlu0 %599
    %v601 = vsel %vm160, %v600, 0
    %603 = vmatprep.subr.mxu0 0.0
    %604 = vmatpush1.msra.mxu0 %v156
    %605 = vmatprep.subr.mxu0 0.0
    %606 = vmatpush1.msra.mxu0 %v157
    %607 = vmatprep.subr.mxu0 0.0
    %608 = vmatpush1.msra.mxu0 %v158
    %609 = vmatprep.subr.mxu0 0.0
    %610 = vmatpush1.msra.mxu0 %v159
    %611 = vmatprep.subr.mxu0 0.0
    %612 = vmatpush1.msra.mxu0 0.0
    %613 = vmatprep.subr.mxu0 0.0
    %614 = vmatpush1.msra.mxu0 0.0
    %615 = vmatprep.subr.mxu0 0.0
    %616 = vmatpush1.msra.mxu0 0.0
    %617 = vmatprep.subr.mxu0 0.0
    %618 = vmatpush1.msra.mxu0 0.0
    %619 = vmatprep.subr.mxu0 0.0
    %620 = vmatpush1.msra.mxu0 0.0
    %621 = vmatprep.subr.mxu0 0.0
    %622 = vmatpush1.msra.mxu0 0.0
    %623 = vmatprep.subr.mxu0 0.0
    %624 = vmatpush1.msra.mxu0 0.0
    %625 = vmatprep.subr.mxu0 0.0
    %626 = vmatpush1.msra.mxu0 0.0
    %627 = vmatprep.subr.mxu0 0.0
    %628 = vmatpush1.msra.mxu0 0.0
    %629 = vmatprep.subr.mxu0 0.0
    %630 = vmatpush1.msra.mxu0 0.0
    %631 = vmatprep.subr.mxu0 0.0
    %632 = vmatpush1.msra.mxu0 0.0
    %633 = vmatprep.subr.mxu0 0.0
    %634 = vmatpush1.msra.mxu0 0.0
    %635 = vmatprep.subr.mxu0 0.0
    %636 = vmatpush1.msra.mxu0 0.0
    %637 = vmatprep.subr.mxu0 0.0
    %638 = vmatpush1.msra.mxu0 0.0
    %639 = vmatprep.subr.mxu0 0.0
    %640 = vmatpush1.msra.mxu0 0.0
    %641 = vmatprep.subr.mxu0 0.0
    %642 = vmatpush1.msra.mxu0 0.0
    %643 = vmatprep.subr.mxu0 0.0
    %644 = vmatpush1.msra.mxu0 0.0
    %645 = vmatprep.subr.mxu0 0.0
    %646 = vmatpush1.msra.mxu0 0.0
    %647 = vmatprep.subr.mxu0 0.0
    %648 = vmatpush1.msra.mxu0 0.0
    %649 = vmatprep.subr.mxu0 0.0
    %650 = vmatpush1.msra.mxu0 0.0
    %651 = vmatprep.subr.mxu0 0.0
    %652 = vmatpush1.msra.mxu0 0.0
    %653 = vmatprep.subr.mxu0 0.0
    %654 = vmatpush1.msra.mxu0 0.0
    %655 = vmatprep.subr.mxu0 0.0
    %656 = vmatpush1.msra.mxu0 0.0
    %657 = vmatprep.subr.mxu0 0.0
    %658 = vmatpush1.msra.mxu0 0.0
    %659 = vmatprep.subr.mxu0 0.0
    %660 = vmatpush1.msra.mxu0 0.0
    %661 = vmatprep.subr.mxu0 0.0
    %662 = vmatpush1.msra.mxu0 0.0
    %663 = vmatprep.subr.mxu0 0.0
    %664 = vmatpush1.msra.mxu0 0.0
    %665 = vmatprep.subr.mxu0 0.0
    %666 = vmatpush1.msra.mxu0 0.0
    %667 = vmatprep.mubr.f32.mxu0 0.0
    %668 = vmatmul.mubr.f32.gmra.mrb[0].mxu0 %v601
    %v669 = vpop.f32.mrb[0].mxu0
    %v670 = vadd.f32 0.0, %v669
    %v671 = vpop.f32.mrb[0].mxu0
    %672 = vdwg.mxu0
    %v673 = vadd.f32 %v153, %v670
    %v674 = vxor.u32 %v673, 2147483648
    %v675 = vmul.f32 %v674, 1.442695
    %v676 = vpow.pop %v675
    %v677 = vadd.f32 %v676, 1.0
    %v678 = vrcp.pop %v677
    %v679 = vmul.f32 1.0, %v678
    %v680 = vtanh.pop %v673
    %v682 = vrot.slane %v585, 6
    %v684 = vmul.f32 %v679, %v682
    %686 = vrot.lane.b32.xlu0 %v680, 64
    %v687 = vpop.permute.xlu0 %686
    %v689 = vmul.f32 %v679, %v687
    %691 = vrot.lane.b32.xlu0 %v689, 32
    %v692 = vpop.permute.xlu0 %691
    %v694 = vadd.f32 %v684, %v692
    %v695 = vtanh.pop %v694
    %697 = vrot.lane.b32.xlu0 %v695, 64
    %v698 = vpop.permute.xlu0 %697
    %v700 = vmul.f32 %v679, %v698
    %702 = vrot.lane.b32.xlu0 %v700, 32
    %v703 = vpop.permute.xlu0 %702
    %705 = vst.msk [vmem:[#allocation2 + $0x8] sm:$0x3] %vm263, %v703
    %v706 = vsel %vm160, %v703, 0
    %708 = vmatprep.subr.mxu0 0.0
    %709 = vmatpush1.msra.mxu0 %v156
    %710 = vmatprep.subr.mxu0 0.0
    %711 = vmatpush1.msra.mxu0 %v157
    %712 = vmatprep.subr.mxu0 0.0
    %713 = vmatpush1.msra.mxu0 %v158
    %714 = vmatprep.subr.mxu0 0.0
    %715 = vmatpush1.msra.mxu0 %v159
    %716 = vmatprep.subr.mxu0 0.0
    %717 = vmatpush1.msra.mxu0 0.0
    %718 = vmatprep.subr.mxu0 0.0
    %719 = vmatpush1.msra.mxu0 0.0
    %720 = vmatprep.subr.mxu0 0.0
    %721 = vmatpush1.msra.mxu0 0.0
    %722 = vmatprep.subr.mxu0 0.0
    %723 = vmatpush1.msra.mxu0 0.0
    %724 = vmatprep.subr.mxu0 0.0
    %725 = vmatpush1.msra.mxu0 0.0
    %726 = vmatprep.subr.mxu0 0.0
    %727 = vmatpush1.msra.mxu0 0.0
    %728 = vmatprep.subr.mxu0 0.0
    %729 = vmatpush1.msra.mxu0 0.0
    %730 = vmatprep.subr.mxu0 0.0
    %731 = vmatpush1.msra.mxu0 0.0
    %732 = vmatprep.subr.mxu0 0.0
    %733 = vmatpush1.msra.mxu0 0.0
    %734 = vmatprep.subr.mxu0 0.0
    %735 = vmatpush1.msra.mxu0 0.0
    %736 = vmatprep.subr.mxu0 0.0
    %737 = vmatpush1.msra.mxu0 0.0
    %738 = vmatprep.subr.mxu0 0.0
    %739 = vmatpush1.msra.mxu0 0.0
    %740 = vmatprep.subr.mxu0 0.0
    %741 = vmatpush1.msra.mxu0 0.0
    %742 = vmatprep.subr.mxu0 0.0
    %743 = vmatpush1.msra.mxu0 0.0
    %744 = vmatprep.subr.mxu0 0.0
    %745 = vmatpush1.msra.mxu0 0.0
    %746 = vmatprep.subr.mxu0 0.0
    %747 = vmatpush1.msra.mxu0 0.0
    %748 = vmatprep.subr.mxu0 0.0
    %749 = vmatpush1.msra.mxu0 0.0
    %750 = vmatprep.subr.mxu0 0.0
    %751 = vmatpush1.msra.mxu0 0.0
    %752 = vmatprep.subr.mxu0 0.0
    %753 = vmatpush1.msra.mxu0 0.0
    %754 = vmatprep.subr.mxu0 0.0
    %755 = vmatpush1.msra.mxu0 0.0
    %756 = vmatprep.subr.mxu0 0.0
    %757 = vmatpush1.msra.mxu0 0.0
    %758 = vmatprep.subr.mxu0 0.0
    %759 = vmatpush1.msra.mxu0 0.0
    %760 = vmatprep.subr.mxu0 0.0
    %761 = vmatpush1.msra.mxu0 0.0
    %762 = vmatprep.subr.mxu0 0.0
    %763 = vmatpush1.msra.mxu0 0.0
    %764 = vmatprep.subr.mxu0 0.0
    %765 = vmatpush1.msra.mxu0 0.0
    %766 = vmatprep.subr.mxu0 0.0
    %767 = vmatpush1.msra.mxu0 0.0
    %768 = vmatprep.subr.mxu0 0.0
    %769 = vmatpush1.msra.mxu0 0.0
    %770 = vmatprep.subr.mxu0 0.0
    %771 = vmatpush1.msra.mxu0 0.0
    %772 = vmatprep.mubr.f32.mxu0 0.0
    %773 = vmatmul.mubr.f32.gmra.mrb[0].mxu0 %v706
    %v774 = vpop.f32.mrb[0].mxu0
    %v775 = vadd.f32 0.0, %v774
    %v776 = vpop.f32.mrb[0].mxu0
    %777 = vdwg.mxu0
    %v779 = vrot.slane %v775, 6
    %v781 = vadd.f32 %v153, %v779
    %v782 = vxor.u32 %v781, 2147483648
    %v783 = vmul.f32 %v782, 1.442695
    %v784 = vpow.pop %v783
    %v785 = vadd.f32 %v784, 1.0
    %v786 = vrcp.pop %v785
    %v787 = vmul.f32 1.0, %v786
    %v788 = vtanh.pop %v781
    %v790 = vrot.slane %v694, 6
    %v792 = vmul.f32 %v787, %v790
    %794 = vrot.lane.b32.xlu0 %v788, 64
    %v795 = vpop.permute.xlu0 %794
    %v797 = vmul.f32 %v787, %v795
    %799 = vrot.lane.b32.xlu0 %v797, 32
    %v800 = vpop.permute.xlu0 %799
    %v802 = vadd.f32 %v792, %v800
    %v803 = vtanh.pop %v802
    %805 = vrot.lane.b32.xlu0 %v803, 64
    %v806 = vpop.permute.xlu0 %805
    %v808 = vmul.f32 %v787, %v806
    %810 = vrot.lane.b32.xlu0 %v808, 32
    %v811 = vpop.permute.xlu0 %810
    %813 = vst.msk [vmem:[#allocation2 + $0x8] sm:$0xc] %vm372, %v811
    %v814 = vrot.slane %v808, 2
    %815 = vrot.lane.b32.xlu0 %v814, 32
    %v816 = vpop.permute.xlu0 %815
    %v817 = vsel %vm160, %v816, 0
    %819 = vmatprep.subr.mxu0 0.0
    %820 = vmatpush1.msra.mxu0 %v156
    %821 = vmatprep.subr.mxu0 0.0
    %822 = vmatpush1.msra.mxu0 %v157
    %823 = vmatprep.subr.mxu0 0.0
    %824 = vmatpush1.msra.mxu0 %v158
    %825 = vmatprep.subr.mxu0 0.0
    %826 = vmatpush1.msra.mxu0 %v159
    %827 = vmatprep.subr.mxu0 0.0
    %828 = vmatpush1.msra.mxu0 0.0
    %829 = vmatprep.subr.mxu0 0.0
    %830 = vmatpush1.msra.mxu0 0.0
    %831 = vmatprep.subr.mxu0 0.0
    %832 = vmatpush1.msra.mxu0 0.0
    %833 = vmatprep.subr.mxu0 0.0
    %834 = vmatpush1.msra.mxu0 0.0
    %835 = vmatprep.subr.mxu0 0.0
    %836 = vmatpush1.msra.mxu0 0.0
    %837 = vmatprep.subr.mxu0 0.0
    %838 = vmatpush1.msra.mxu0 0.0
    %839 = vmatprep.subr.mxu0 0.0
    %840 = vmatpush1.msra.mxu0 0.0
    %841 = vmatprep.subr.mxu0 0.0
    %842 = vmatpush1.msra.mxu0 0.0
    %843 = vmatprep.subr.mxu0 0.0
    %844 = vmatpush1.msra.mxu0 0.0
    %845 = vmatprep.subr.mxu0 0.0
    %846 = vmatpush1.msra.mxu0 0.0
    %847 = vmatprep.subr.mxu0 0.0
    %848 = vmatpush1.msra.mxu0 0.0
    %849 = vmatprep.subr.mxu0 0.0
    %850 = vmatpush1.msra.mxu0 0.0
    %851 = vmatprep.subr.mxu0 0.0
    %852 = vmatpush1.msra.mxu0 0.0
    %853 = vmatprep.subr.mxu0 0.0
    %854 = vmatpush1.msra.mxu0 0.0
    %855 = vmatprep.subr.mxu0 0.0
    %856 = vmatpush1.msra.mxu0 0.0
    %857 = vmatprep.subr.mxu0 0.0
    %858 = vmatpush1.msra.mxu0 0.0
    %859 = vmatprep.subr.mxu0 0.0
    %860 = vmatpush1.msra.mxu0 0.0
    %861 = vmatprep.subr.mxu0 0.0
    %862 = vmatpush1.msra.mxu0 0.0
    %863 = vmatprep.subr.mxu0 0.0
    %864 = vmatpush1.msra.mxu0 0.0
    %865 = vmatprep.subr.mxu0 0.0
    %866 = vmatpush1.msra.mxu0 0.0
    %867 = vmatprep.subr.mxu0 0.0
    %868 = vmatpush1.msra.mxu0 0.0
    %869 = vmatprep.subr.mxu0 0.0
    %870 = vmatpush1.msra.mxu0 0.0
    %871 = vmatprep.subr.mxu0 0.0
    %872 = vmatpush1.msra.mxu0 0.0
    %873 = vmatprep.subr.mxu0 0.0
    %874 = vmatpush1.msra.mxu0 0.0
    %875 = vmatprep.subr.mxu0 0.0
    %876 = vmatpush1.msra.mxu0 0.0
    %877 = vmatprep.subr.mxu0 0.0
    %878 = vmatpush1.msra.mxu0 0.0
    %879 = vmatprep.subr.mxu0 0.0
    %880 = vmatpush1.msra.mxu0 0.0
    %881 = vmatprep.subr.mxu0 0.0
    %882 = vmatpush1.msra.mxu0 0.0
    %883 = vmatprep.mubr.f32.mxu0 0.0
    %884 = vmatmul.mubr.f32.gmra.mrb[0].mxu0 %v817
    %v885 = vpop.f32.mrb[0].mxu0
    %v886 = vadd.f32 0.0, %v885
    %v887 = vpop.f32.mrb[0].mxu0
    %888 = vdwg.mxu0
    %v890 = vrot.slane %v886, 4
    %v892 = vadd.f32 %v153, %v890
    %v893 = vxor.u32 %v892, 2147483648
    %v894 = vmul.f32 %v893, 1.442695
    %v895 = vpow.pop %v894
    %v896 = vadd.f32 %v895, 1.0
    %v897 = vrcp.pop %v896
    %v898 = vmul.f32 1.0, %v897
    %v899 = vtanh.pop %v892
    %v901 = vrot.slane %v802, 6
    %v903 = vmul.f32 %v898, %v901
    %905 = vrot.lane.b32.xlu0 %v899, 64
    %v906 = vpop.permute.xlu0 %905
    %v908 = vmul.f32 %v898, %v906
    %910 = vrot.lane.b32.xlu0 %v908, 32
    %v911 = vpop.permute.xlu0 %910
    %v913 = vadd.f32 %v903, %v911
    %v914 = vtanh.pop %v913
    %916 = vrot.lane.b32.xlu0 %v914, 64
    %v917 = vpop.permute.xlu0 %916
    %v919 = vmul.f32 %v898, %v917
    %921 = vrot.lane.b32.xlu0 %v919, 32
    %v922 = vpop.permute.xlu0 %921
    %924 = vst.msk [vmem:[#allocation2 + $0x8] sm:$0x30] %vm484, %v922
    %v925 = vrot.slane %v919, 4
    %926 = vrot.lane.b32.xlu0 %v925, 32
    %v927 = vpop.permute.xlu0 %926
    %v928 = vsel %vm160, %v927, 0
    %930 = vmatprep.subr.mxu0 0.0
    %931 = vmatpush1.msra.mxu0 %v156
    %932 = vmatprep.subr.mxu0 0.0
    %933 = vmatpush1.msra.mxu0 %v157
    %934 = vmatprep.subr.mxu0 0.0
    %935 = vmatpush1.msra.mxu0 %v158
    %936 = vmatprep.subr.mxu0 0.0
    %937 = vmatpush1.msra.mxu0 %v159
    %938 = vmatprep.subr.mxu0 0.0
    %939 = vmatpush1.msra.mxu0 0.0
    %940 = vmatprep.subr.mxu0 0.0
    %941 = vmatpush1.msra.mxu0 0.0
    %942 = vmatprep.subr.mxu0 0.0
    %943 = vmatpush1.msra.mxu0 0.0
    %944 = vmatprep.subr.mxu0 0.0
    %945 = vmatpush1.msra.mxu0 0.0
    %946 = vmatprep.subr.mxu0 0.0
    %947 = vmatpush1.msra.mxu0 0.0
    %948 = vmatprep.subr.mxu0 0.0
    %949 = vmatpush1.msra.mxu0 0.0
    %950 = vmatprep.subr.mxu0 0.0
    %951 = vmatpush1.msra.mxu0 0.0
    %952 = vmatprep.subr.mxu0 0.0
    %953 = vmatpush1.msra.mxu0 0.0
    %954 = vmatprep.subr.mxu0 0.0
    %955 = vmatpush1.msra.mxu0 0.0
    %956 = vmatprep.subr.mxu0 0.0
    %957 = vmatpush1.msra.mxu0 0.0
    %958 = vmatprep.subr.mxu0 0.0
    %959 = vmatpush1.msra.mxu0 0.0
    %960 = vmatprep.subr.mxu0 0.0
    %961 = vmatpush1.msra.mxu0 0.0
    %962 = vmatprep.subr.mxu0 0.0
    %963 = vmatpush1.msra.mxu0 0.0
    %964 = vmatprep.subr.mxu0 0.0
    %965 = vmatpush1.msra.mxu0 0.0
    %966 = vmatprep.subr.mxu0 0.0
    %967 = vmatpush1.msra.mxu0 0.0
    %968 = vmatprep.subr.mxu0 0.0
    %969 = vmatpush1.msra.mxu0 0.0
    %970 = vmatprep.subr.mxu0 0.0
    %971 = vmatpush1.msra.mxu0 0.0
    %972 = vmatprep.subr.mxu0 0.0
    %973 = vmatpush1.msra.mxu0 0.0
    %974 = vmatprep.subr.mxu0 0.0
    %975 = vmatpush1.msra.mxu0 0.0
    %976 = vmatprep.subr.mxu0 0.0
    %977 = vmatpush1.msra.mxu0 0.0
    %978 = vmatprep.subr.mxu0 0.0
    %979 = vmatpush1.msra.mxu0 0.0
    %980 = vmatprep.subr.mxu0 0.0
    %981 = vmatpush1.msra.mxu0 0.0
    %982 = vmatprep.subr.mxu0 0.0
    %983 = vmatpush1.msra.mxu0 0.0
    %984 = vmatprep.subr.mxu0 0.0
    %985 = vmatpush1.msra.mxu0 0.0
    %986 = vmatprep.subr.mxu0 0.0
    %987 = vmatpush1.msra.mxu0 0.0
    %988 = vmatprep.subr.mxu0 0.0
    %989 = vmatpush1.msra.mxu0 0.0
    %990 = vmatprep.subr.mxu0 0.0
    %991 = vmatpush1.msra.mxu0 0.0
    %992 = vmatprep.subr.mxu0 0.0
    %993 = vmatpush1.msra.mxu0 0.0
    %994 = vmatprep.mubr.f32.mxu0 0.0
    %995 = vmatmul.mubr.f32.gmra.mrb[0].mxu0 %v928
    %v996 = vpop.f32.mrb[0].mxu0
    %v997 = vadd.f32 0.0, %v996
    %v998 = vpop.f32.mrb[0].mxu0
    %999 = vdwg.mxu0
    %v1001 = vrot.slane %v997, 2
    %v1003 = vadd.f32 %v153, %v1001
    %v1004 = vxor.u32 %v1003, 2147483648
    %v1005 = vmul.f32 %v1004, 1.442695
    %v1006 = vpow.pop %v1005
    %v1007 = vadd.f32 %v1006, 1.0
    %v1008 = vrcp.pop %v1007
    %v1009 = vmul.f32 1.0, %v1008
    %v1010 = vtanh.pop %v1003
    %v1012 = vrot.slane %v913, 6
    %v1014 = vmul.f32 %v1009, %v1012
    %1016 = vrot.lane.b32.xlu0 %v1010, 64
    %v1017 = vpop.permute.xlu0 %1016
    %v1019 = vmul.f32 %v1009, %v1017
    %1021 = vrot.lane.b32.xlu0 %v1019, 32
    %v1022 = vpop.permute.xlu0 %1021
    %v1024 = vadd.f32 %v1014, %v1022
    %v1025 = vtanh.pop %v1024
    %1027 = vrot.lane.b32.xlu0 %v1025, 64
    %v1028 = vpop.permute.xlu0 %1027
    %v1030 = vmul.f32 %v1009, %v1028
    %1032 = vrot.lane.b32.xlu0 %v1030, 32
    %v1033 = vpop.permute.xlu0 %1032
    %1035 = vst.msk [vmem:[#allocation2 + $0x8] sm:$0xc0] %vm596, %v1033
    %1036 = vst.msk [vmem:[#allocation3 - $0x6] sm:$0xc0] %vm596, %v1033
    %v1037 = vld [vmem:[#allocation2] sm:$0xff]
    %v1038 = vld [vmem:[#allocation2 + $0x8] sm:$0xff]
    %v1039 = vld [vmem:[%s4] sm:$0xff]
    %v1040 = vld [vmem:[%s4 + $0x8] sm:$0xff]
    %v1041 = vld [vmem:[%s4 + $0x10] sm:$0xff]
    %v1042 = vld [vmem:[%s4 + $0x18] sm:$0xff]
    %v1043 = vld [vmem:[%s6] sm:$0x1]
    %v1045 = vlaneseq
    %v1046 = vshrl.u32 %v1045, 7
    %v1047 = vsub.s32 0, %v1046
    %v1048 = vrot.slane %v1043, %v1047
    %v1051 = vsel %vm160, %v1037, 0
    %v1054 = vsel %vm160, %v1038, 0
    %1056 = vmatprep.subr.mxu0 0.0
    %1057 = vmatpush1.msra.mxu0 %v1039
    %1058 = vmatprep.subr.mxu0 0.0
    %1059 = vmatpush1.msra.mxu0 %v1040
    %1060 = vmatprep.subr.mxu0 0.0
    %1061 = vmatpush1.msra.mxu0 %v1041
    %1062 = vmatprep.subr.mxu0 0.0
    %1063 = vmatpush1.msra.mxu0 %v1042
    %1064 = vmatprep.subr.mxu0 0.0
    %1065 = vmatpush1.msra.mxu0 0.0
    %1066 = vmatprep.subr.mxu0 0.0
    %1067 = vmatpush1.msra.mxu0 0.0
    %1068 = vmatprep.subr.mxu0 0.0
    %1069 = vmatpush1.msra.mxu0 0.0
    %1070 = vmatprep.subr.mxu0 0.0
    %1071 = vmatpush1.msra.mxu0 0.0
    %1072 = vmatprep.subr.mxu0 0.0
    %1073 = vmatpush1.msra.mxu0 0.0
    %1074 = vmatprep.subr.mxu0 0.0
    %1075 = vmatpush1.msra.mxu0 0.0
    %1076 = vmatprep.subr.mxu0 0.0
    %1077 = vmatpush1.msra.mxu0 0.0
    %1078 = vmatprep.subr.mxu0 0.0
    %1079 = vmatpush1.msra.mxu0 0.0
    %1080 = vmatprep.subr.mxu0 0.0
    %1081 = vmatpush1.msra.mxu0 0.0
    %1082 = vmatprep.subr.mxu0 0.0
    %1083 = vmatpush1.msra.mxu0 0.0
    %1084 = vmatprep.subr.mxu0 0.0
    %1085 = vmatpush1.msra.mxu0 0.0
    %1086 = vmatprep.subr.mxu0 0.0
    %1087 = vmatpush1.msra.mxu0 0.0
    %1088 = vmatprep.subr.mxu0 0.0
    %1089 = vmatpush1.msra.mxu0 0.0
    %1090 = vmatprep.subr.mxu0 0.0
    %1091 = vmatpush1.msra.mxu0 0.0
    %1092 = vmatprep.subr.mxu0 0.0
    %1093 = vmatpush1.msra.mxu0 0.0
    %1094 = vmatprep.subr.mxu0 0.0
    %1095 = vmatpush1.msra.mxu0 0.0
    %1096 = vmatprep.subr.mxu0 0.0
    %1097 = vmatpush1.msra.mxu0 0.0
    %1098 = vmatprep.subr.mxu0 0.0
    %1099 = vmatpush1.msra.mxu0 0.0
    %1100 = vmatprep.subr.mxu0 0.0
    %1101 = vmatpush1.msra.mxu0 0.0
    %1102 = vmatprep.subr.mxu0 0.0
    %1103 = vmatpush1.msra.mxu0 0.0
    %1104 = vmatprep.subr.mxu0 0.0
    %1105 = vmatpush1.msra.mxu0 0.0
    %1106 = vmatprep.subr.mxu0 0.0
    %1107 = vmatpush1.msra.mxu0 0.0
    %1108 = vmatprep.subr.mxu0 0.0
    %1109 = vmatpush1.msra.mxu0 0.0
    %1110 = vmatprep.subr.mxu0 0.0
    %1111 = vmatpush1.msra.mxu0 0.0
    %1112 = vmatprep.subr.mxu0 0.0
    %1113 = vmatpush1.msra.mxu0 0.0
    %1114 = vmatprep.subr.mxu0 0.0
    %1115 = vmatpush1.msra.mxu0 0.0
    %1116 = vmatprep.subr.mxu0 0.0
    %1117 = vmatpush1.msra.mxu0 0.0
    %1118 = vmatprep.subr.mxu0 0.0
    %1119 = vmatpush1.msra.mxu0 0.0
    %1120 = vmatprep.mubr.f32.mxu0 0.0
    %1121 = vmatmul.mubr.f32.gmra.mrb[0].mxu0 %v1051
    %v1122 = vpop.f32.mrb[0].mxu0
    %v1123 = vadd.f32 %v1048, %v1122
    %v1124 = vpop.f32.mrb[0].mxu0
    %1125 = vmatprep.mubr.f32.mxu0 0.0
    %1126 = vmatmul.mubr.f32.gmra.mrb[0].mxu0 %v1054
    %v1127 = vpop.f32.mrb[0].mxu0
    %v1128 = vadd.f32 %v1048, %v1127
    %v1129 = vpop.f32.mrb[0].mxu0
    %1130 = vdwg.mxu0
    %v1131 = vld [vmem:[%s5] sm:$0xff]
    %v1132 = vld [vmem:[%s5 + $0x8] sm:$0xff]
    %v1133 = vld [vmem:[%s5 + $0x10] sm:$0xff]
    %v1134 = vld [vmem:[%s5 + $0x18] sm:$0xff]
    %1135 = vmatprep.subr.mxu0 0.0
    %1136 = vmatpush1.msra.mxu0 %v1131
    %1137 = vmatprep.subr.mxu0 0.0
    %1138 = vmatpush1.msra.mxu0 %v1132
    %1139 = vmatprep.subr.mxu0 0.0
    %1140 = vmatpush1.msra.mxu0 %v1133
    %1141 = vmatprep.subr.mxu0 0.0
    %1142 = vmatpush1.msra.mxu0 %v1134
    %1143 = vmatprep.subr.mxu0 0.0
    %1144 = vmatpush1.msra.mxu0 0.0
    %1145 = vmatprep.subr.mxu0 0.0
    %1146 = vmatpush1.msra.mxu0 0.0
    %1147 = vmatprep.subr.mxu0 0.0
    %1148 = vmatpush1.msra.mxu0 0.0
    %1149 = vmatprep.subr.mxu0 0.0
    %1150 = vmatpush1.msra.mxu0 0.0
    %1151 = vmatprep.subr.mxu0 0.0
    %1152 = vmatpush1.msra.mxu0 0.0
    %1153 = vmatprep.subr.mxu0 0.0
    %1154 = vmatpush1.msra.mxu0 0.0
    %1155 = vmatprep.subr.mxu0 0.0
    %1156 = vmatpush1.msra.mxu0 0.0
    %1157 = vmatprep.subr.mxu0 0.0
    %1158 = vmatpush1.msra.mxu0 0.0
    %1159 = vmatprep.subr.mxu0 0.0
    %1160 = vmatpush1.msra.mxu0 0.0
    %1161 = vmatprep.subr.mxu0 0.0
    %1162 = vmatpush1.msra.mxu0 0.0
    %1163 = vmatprep.subr.mxu0 0.0
    %1164 = vmatpush1.msra.mxu0 0.0
    %1165 = vmatprep.subr.mxu0 0.0
    %1166 = vmatpush1.msra.mxu0 0.0
    %1167 = vmatprep.subr.mxu0 0.0
    %1168 = vmatpush1.msra.mxu0 0.0
    %1169 = vmatprep.subr.mxu0 0.0
    %1170 = vmatpush1.msra.mxu0 0.0
    %1171 = vmatprep.subr.mxu0 0.0
    %1172 = vmatpush1.msra.mxu0 0.0
    %1173 = vmatprep.subr.mxu0 0.0
    %1174 = vmatpush1.msra.mxu0 0.0
    %1175 = vmatprep.subr.mxu0 0.0
    %1176 = vmatpush1.msra.mxu0 0.0
    %1177 = vmatprep.subr.mxu0 0.0
    %1178 = vmatpush1.msra.mxu0 0.0
    %1179 = vmatprep.subr.mxu0 0.0
    %1180 = vmatpush1.msra.mxu0 0.0
    %1181 = vmatprep.subr.mxu0 0.0
    %1182 = vmatpush1.msra.mxu0 0.0
    %1183 = vmatprep.subr.mxu0 0.0
    %1184 = vmatpush1.msra.mxu0 0.0
    %1185 = vmatprep.subr.mxu0 0.0
    %1186 = vmatpush1.msra.mxu0 0.0
    %1187 = vmatprep.subr.mxu0 0.0
    %1188 = vmatpush1.msra.mxu0 0.0
    %1189 = vmatprep.subr.mxu0 0.0
    %1190 = vmatpush1.msra.mxu0 0.0
    %1191 = vmatprep.subr.mxu0 0.0
    %1192 = vmatpush1.msra.mxu0 0.0
    %1193 = vmatprep.subr.mxu0 0.0
    %1194 = vmatpush1.msra.mxu0 0.0
    %1195 = vmatprep.subr.mxu0 0.0
    %1196 = vmatpush1.msra.mxu0 0.0
    %1197 = vmatprep.subr.mxu0 0.0
    %1198 = vmatpush1.msra.mxu0 0.0
    %1199 = vmatprep.mubr.f32.mxu0 0.0
    %1200 = vmatmul.mubr.f32.gmra.mrb[0].mxu0 %v162
    %v1201 = vpop.f32.mrb[0].mxu0
    %v1202 = vadd.f32 0.0, %v1201
    %v1203 = vpop.f32.mrb[0].mxu0
    %1204 = vdwg.mxu0
    %v1205 = vadd.f32 %v1123, %v1202
    %v1206 = vxor.u32 %v1205, 2147483648
    %v1207 = vmul.f32 %v1206, 1.442695
    %v1208 = vpow.pop %v1207
    %v1209 = vadd.f32 %v1208, 1.0
    %v1210 = vrcp.pop %v1209
    %v1211 = vmul.f32 1.0, %v1210
    %v1212 = vtanh.pop %v1205
    %v1213 = vmul.f32 %v1211, 0.0
    %1215 = vrot.lane.b32.xlu0 %v1212, 64
    %v1216 = vpop.permute.xlu0 %1215
    %v1218 = vmul.f32 %v1211, %v1216
    %1220 = vrot.lane.b32.xlu0 %v1218, 32
    %v1221 = vpop.permute.xlu0 %1220
    %v1223 = vadd.f32 %v1213, %v1221
    %v1224 = vtanh.pop %v1223
    %1226 = vrot.lane.b32.xlu0 %v1224, 64
    %v1227 = vpop.permute.xlu0 %1226
    %v1229 = vmul.f32 %v1211, %v1227
    %1231 = vrot.lane.b32.xlu0 %v1229, 32
    %v1232 = vpop.permute.xlu0 %1231
    %v1233 = vsel %vm160, %v1232, 0
    %1235 = vmatprep.subr.mxu0 0.0
    %1236 = vmatpush1.msra.mxu0 %v1131
    %1237 = vmatprep.subr.mxu0 0.0
    %1238 = vmatpush1.msra.mxu0 %v1132
    %1239 = vmatprep.subr.mxu0 0.0
    %1240 = vmatpush1.msra.mxu0 %v1133
    %1241 = vmatprep.subr.mxu0 0.0
    %1242 = vmatpush1.msra.mxu0 %v1134
    %1243 = vmatprep.subr.mxu0 0.0
    %1244 = vmatpush1.msra.mxu0 0.0
    %1245 = vmatprep.subr.mxu0 0.0
    %1246 = vmatpush1.msra.mxu0 0.0
    %1247 = vmatprep.subr.mxu0 0.0
    %1248 = vmatpush1.msra.mxu0 0.0
    %1249 = vmatprep.subr.mxu0 0.0
    %1250 = vmatpush1.msra.mxu0 0.0
    %1251 = vmatprep.subr.mxu0 0.0
    %1252 = vmatpush1.msra.mxu0 0.0
    %1253 = vmatprep.subr.mxu0 0.0
    %1254 = vmatpush1.msra.mxu0 0.0
    %1255 = vmatprep.subr.mxu0 0.0
    %1256 = vmatpush1.msra.mxu0 0.0
    %1257 = vmatprep.subr.mxu0 0.0
    %1258 = vmatpush1.msra.mxu0 0.0
    %1259 = vmatprep.subr.mxu0 0.0
    %1260 = vmatpush1.msra.mxu0 0.0
    %1261 = vmatprep.subr.mxu0 0.0
    %1262 = vmatpush1.msra.mxu0 0.0
    %1263 = vmatprep.subr.mxu0 0.0
    %1264 = vmatpush1.msra.mxu0 0.0
    %1265 = vmatprep.subr.mxu0 0.0
    %1266 = vmatpush1.msra.mxu0 0.0
    %1267 = vmatprep.subr.mxu0 0.0
    %1268 = vmatpush1.msra.mxu0 0.0
    %1269 = vmatprep.subr.mxu0 0.0
    %1270 = vmatpush1.msra.mxu0 0.0
    %1271 = vmatprep.subr.mxu0 0.0
    %1272 = vmatpush1.msra.mxu0 0.0
    %1273 = vmatprep.subr.mxu0 0.0
    %1274 = vmatpush1.msra.mxu0 0.0
    %1275 = vmatprep.subr.mxu0 0.0
    %1276 = vmatpush1.msra.mxu0 0.0
    %1277 = vmatprep.subr.mxu0 0.0
    %1278 = vmatpush1.msra.mxu0 0.0
    %1279 = vmatprep.subr.mxu0 0.0
    %1280 = vmatpush1.msra.mxu0 0.0
    %1281 = vmatprep.subr.mxu0 0.0
    %1282 = vmatpush1.msra.mxu0 0.0
    %1283 = vmatprep.subr.mxu0 0.0
    %1284 = vmatpush1.msra.mxu0 0.0
    %1285 = vmatprep.subr.mxu0 0.0
    %1286 = vmatpush1.msra.mxu0 0.0
    %1287 = vmatprep.subr.mxu0 0.0
    %1288 = vmatpush1.msra.mxu0 0.0
    %1289 = vmatprep.subr.mxu0 0.0
    %1290 = vmatpush1.msra.mxu0 0.0
    %1291 = vmatprep.subr.mxu0 0.0
    %1292 = vmatpush1.msra.mxu0 0.0
    %1293 = vmatprep.subr.mxu0 0.0
    %1294 = vmatpush1.msra.mxu0 0.0
    %1295 = vmatprep.subr.mxu0 0.0
    %1296 = vmatpush1.msra.mxu0 0.0
    %1297 = vmatprep.subr.mxu0 0.0
    %1298 = vmatpush1.msra.mxu0 0.0
    %1299 = vmatprep.mubr.f32.mxu0 0.0
    %1300 = vmatmul.mubr.f32.gmra.mrb[0].mxu0 %v1233
    %v1301 = vpop.f32.mrb[0].mxu0
    %v1302 = vadd.f32 0.0, %v1301
    %v1303 = vpop.f32.mrb[0].mxu0
    %1304 = vdwg.mxu0
    %v1306 = vrot.slane %v1302, 6
    %v1308 = vadd.f32 %v1123, %v1306
    %v1309 = vxor.u32 %v1308, 2147483648
    %v1310 = vmul.f32 %v1309, 1.442695
    %v1311 = vpow.pop %v1310
    %v1312 = vadd.f32 %v1311, 1.0
    %v1313 = vrcp.pop %v1312
    %v1314 = vmul.f32 1.0, %v1313
    %v1315 = vtanh.pop %v1308
    %v1317 = vrot.slane %v1223, 6
    %v1319 = vmul.f32 %v1314, %v1317
    %1321 = vrot.lane.b32.xlu0 %v1315, 64
    %v1322 = vpop.permute.xlu0 %1321
    %v1324 = vmul.f32 %v1314, %v1322
    %1326 = vrot.lane.b32.xlu0 %v1324, 32
    %v1327 = vpop.permute.xlu0 %1326
    %v1329 = vadd.f32 %v1319, %v1327
    %v1330 = vtanh.pop %v1329
    %1332 = vrot.lane.b32.xlu0 %v1330, 64
    %v1333 = vpop.permute.xlu0 %1332
    %v1335 = vmul.f32 %v1314, %v1333
    %v1337 = vrot.slane %v1335, 2
    %1338 = vrot.lane.b32.xlu0 %v1337, 32
    %v1339 = vpop.permute.xlu0 %1338
    %v1340 = vsel %vm160, %v1339, 0
    %1342 = vmatprep.subr.mxu0 0.0
    %1343 = vmatpush1.msra.mxu0 %v1131
    %1344 = vmatprep.subr.mxu0 0.0
    %1345 = vmatpush1.msra.mxu0 %v1132
    %1346 = vmatprep.subr.mxu0 0.0
    %1347 = vmatpush1.msra.mxu0 %v1133
    %1348 = vmatprep.subr.mxu0 0.0
    %1349 = vmatpush1.msra.mxu0 %v1134
    %1350 = vmatprep.subr.mxu0 0.0
    %1351 = vmatpush1.msra.mxu0 0.0
    %1352 = vmatprep.subr.mxu0 0.0
    %1353 = vmatpush1.msra.mxu0 0.0
    %1354 = vmatprep.subr.mxu0 0.0
    %1355 = vmatpush1.msra.mxu0 0.0
    %1356 = vmatprep.subr.mxu0 0.0
    %1357 = vmatpush1.msra.mxu0 0.0
    %1358 = vmatprep.subr.mxu0 0.0
    %1359 = vmatpush1.msra.mxu0 0.0
    %1360 = vmatprep.subr.mxu0 0.0
    %1361 = vmatpush1.msra.mxu0 0.0
    %1362 = vmatprep.subr.mxu0 0.0
    %1363 = vmatpush1.msra.mxu0 0.0
    %1364 = vmatprep.subr.mxu0 0.0
    %1365 = vmatpush1.msra.mxu0 0.0
    %1366 = vmatprep.subr.mxu0 0.0
    %1367 = vmatpush1.msra.mxu0 0.0
    %1368 = vmatprep.subr.mxu0 0.0
    %1369 = vmatpush1.msra.mxu0 0.0
    %1370 = vmatprep.subr.mxu0 0.0
    %1371 = vmatpush1.msra.mxu0 0.0
    %1372 = vmatprep.subr.mxu0 0.0
    %1373 = vmatpush1.msra.mxu0 0.0
    %1374 = vmatprep.subr.mxu0 0.0
    %1375 = vmatpush1.msra.mxu0 0.0
    %1376 = vmatprep.subr.mxu0 0.0
    %1377 = vmatpush1.msra.mxu0 0.0
    %1378 = vmatprep.subr.mxu0 0.0
    %1379 = vmatpush1.msra.mxu0 0.0
    %1380 = vmatprep.subr.mxu0 0.0
    %1381 = vmatpush1.msra.mxu0 0.0
    %1382 = vmatprep.subr.mxu0 0.0
    %1383 = vmatpush1.msra.mxu0 0.0
    %1384 = vmatprep.subr.mxu0 0.0
    %1385 = vmatpush1.msra.mxu0 0.0
    %1386 = vmatprep.subr.mxu0 0.0
    %1387 = vmatpush1.msra.mxu0 0.0
    %1388 = vmatprep.subr.mxu0 0.0
    %1389 = vmatpush1.msra.mxu0 0.0
    %1390 = vmatprep.subr.mxu0 0.0
    %1391 = vmatpush1.msra.mxu0 0.0
    %1392 = vmatprep.subr.mxu0 0.0
    %1393 = vmatpush1.msra.mxu0 0.0
    %1394 = vmatprep.subr.mxu0 0.0
    %1395 = vmatpush1.msra.mxu0 0.0
    %1396 = vmatprep.subr.mxu0 0.0
    %1397 = vmatpush1.msra.mxu0 0.0
    %1398 = vmatprep.subr.mxu0 0.0
    %1399 = vmatpush1.msra.mxu0 0.0
    %1400 = vmatprep.subr.mxu0 0.0
    %1401 = vmatpush1.msra.mxu0 0.0
    %1402 = vmatprep.subr.mxu0 0.0
    %1403 = vmatpush1.msra.mxu0 0.0
    %1404 = vmatprep.subr.mxu0 0.0
    %1405 = vmatpush1.msra.mxu0 0.0
    %1406 = vmatprep.mubr.f32.mxu0 0.0
    %1407 = vmatmul.mubr.f32.gmra.mrb[0].mxu0 %v1340
    %v1408 = vpop.f32.mrb[0].mxu0
    %v1409 = vadd.f32 0.0, %v1408
    %v1410 = vpop.f32.mrb[0].mxu0
    %1411 = vdwg.mxu0
    %v1413 = vrot.slane %v1409, 4
    %v1415 = vadd.f32 %v1123, %v1413
    %v1416 = vxor.u32 %v1415, 2147483648
    %v1417 = vmul.f32 %v1416, 1.442695
    %v1418 = vpow.pop %v1417
    %v1419 = vadd.f32 %v1418, 1.0
    %v1420 = vrcp.pop %v1419
    %v1421 = vmul.f32 1.0, %v1420
    %v1422 = vtanh.pop %v1415
    %v1424 = vrot.slane %v1329, 6
    %v1426 = vmul.f32 %v1421, %v1424
    %1428 = vrot.lane.b32.xlu0 %v1422, 64
    %v1429 = vpop.permute.xlu0 %1428
    %v1431 = vmul.f32 %v1421, %v1429
    %1433 = vrot.lane.b32.xlu0 %v1431, 32
    %v1434 = vpop.permute.xlu0 %1433
    %v1436 = vadd.f32 %v1426, %v1434
    %v1437 = vtanh.pop %v1436
    %1439 = vrot.lane.b32.xlu0 %v1437, 64
    %v1440 = vpop.permute.xlu0 %1439
    %v1442 = vmul.f32 %v1421, %v1440
    %v1444 = vrot.slane %v1442, 4
    %1445 = vrot.lane.b32.xlu0 %v1444, 32
    %v1446 = vpop.permute.xlu0 %1445
    %v1447 = vsel %vm160, %v1446, 0
    %1449 = vmatprep.subr.mxu0 0.0
    %1450 = vmatpush1.msra.mxu0 %v1131
    %1451 = vmatprep.subr.mxu0 0.0
    %1452 = vmatpush1.msra.mxu0 %v1132
    %1453 = vmatprep.subr.mxu0 0.0
    %1454 = vmatpush1.msra.mxu0 %v1133
    %1455 = vmatprep.subr.mxu0 0.0
    %1456 = vmatpush1.msra.mxu0 %v1134
    %1457 = vmatprep.subr.mxu0 0.0
    %1458 = vmatpush1.msra.mxu0 0.0
    %1459 = vmatprep.subr.mxu0 0.0
    %1460 = vmatpush1.msra.mxu0 0.0
    %1461 = vmatprep.subr.mxu0 0.0
    %1462 = vmatpush1.msra.mxu0 0.0
    %1463 = vmatprep.subr.mxu0 0.0
    %1464 = vmatpush1.msra.mxu0 0.0
    %1465 = vmatprep.subr.mxu0 0.0
    %1466 = vmatpush1.msra.mxu0 0.0
    %1467 = vmatprep.subr.mxu0 0.0
    %1468 = vmatpush1.msra.mxu0 0.0
    %1469 = vmatprep.subr.mxu0 0.0
    %1470 = vmatpush1.msra.mxu0 0.0
    %1471 = vmatprep.subr.mxu0 0.0
    %1472 = vmatpush1.msra.mxu0 0.0
    %1473 = vmatprep.subr.mxu0 0.0
    %1474 = vmatpush1.msra.mxu0 0.0
    %1475 = vmatprep.subr.mxu0 0.0
    %1476 = vmatpush1.msra.mxu0 0.0
    %1477 = vmatprep.subr.mxu0 0.0
    %1478 = vmatpush1.msra.mxu0 0.0
    %1479 = vmatprep.subr.mxu0 0.0
    %1480 = vmatpush1.msra.mxu0 0.0
    %1481 = vmatprep.subr.mxu0 0.0
    %1482 = vmatpush1.msra.mxu0 0.0
    %1483 = vmatprep.subr.mxu0 0.0
    %1484 = vmatpush1.msra.mxu0 0.0
    %1485 = vmatprep.subr.mxu0 0.0
    %1486 = vmatpush1.msra.mxu0 0.0
    %1487 = vmatprep.subr.mxu0 0.0
    %1488 = vmatpush1.msra.mxu0 0.0
    %1489 = vmatprep.subr.mxu0 0.0
    %1490 = vmatpush1.msra.mxu0 0.0
    %1491 = vmatprep.subr.mxu0 0.0
    %1492 = vmatpush1.msra.mxu0 0.0
    %1493 = vmatprep.subr.mxu0 0.0
    %1494 = vmatpush1.msra.mxu0 0.0
    %1495 = vmatprep.subr.mxu0 0.0
    %1496 = vmatpush1.msra.mxu0 0.0
    %1497 = vmatprep.subr.mxu0 0.0
    %1498 = vmatpush1.msra.mxu0 0.0
    %1499 = vmatprep.subr.mxu0 0.0
    %1500 = vmatpush1.msra.mxu0 0.0
    %1501 = vmatprep.subr.mxu0 0.0
    %1502 = vmatpush1.msra.mxu0 0.0
    %1503 = vmatprep.subr.mxu0 0.0
    %1504 = vmatpush1.msra.mxu0 0.0
    %1505 = vmatprep.subr.mxu0 0.0
    %1506 = vmatpush1.msra.mxu0 0.0
    %1507 = vmatprep.subr.mxu0 0.0
    %1508 = vmatpush1.msra.mxu0 0.0
    %1509 = vmatprep.subr.mxu0 0.0
    %1510 = vmatpush1.msra.mxu0 0.0
    %1511 = vmatprep.subr.mxu0 0.0
    %1512 = vmatpush1.msra.mxu0 0.0
    %1513 = vmatprep.mubr.f32.mxu0 0.0
    %1514 = vmatmul.mubr.f32.gmra.mrb[0].mxu0 %v1447
    %v1515 = vpop.f32.mrb[0].mxu0
    %v1516 = vadd.f32 0.0, %v1515
    %v1517 = vpop.f32.mrb[0].mxu0
    %1518 = vdwg.mxu0
    %v1520 = vrot.slane %v1516, 2
    %v1522 = vadd.f32 %v1123, %v1520
    %v1523 = vxor.u32 %v1522, 2147483648
    %v1524 = vmul.f32 %v1523, 1.442695
    %v1525 = vpow.pop %v1524
    %v1526 = vadd.f32 %v1525, 1.0
    %v1527 = vrcp.pop %v1526
    %v1528 = vmul.f32 1.0, %v1527
    %v1529 = vtanh.pop %v1522
    %v1531 = vrot.slane %v1436, 6
    %v1533 = vmul.f32 %v1528, %v1531
    %1535 = vrot.lane.b32.xlu0 %v1529, 64
    %v1536 = vpop.permute.xlu0 %1535
    %v1538 = vmul.f32 %v1528, %v1536
    %1540 = vrot.lane.b32.xlu0 %v1538, 32
    %v1541 = vpop.permute.xlu0 %1540
    %v1543 = vadd.f32 %v1533, %v1541
    %v1544 = vtanh.pop %v1543
    %1546 = vrot.lane.b32.xlu0 %v1544, 64
    %v1547 = vpop.permute.xlu0 %1546
    %v1549 = vmul.f32 %v1528, %v1547
    %v1551 = vrot.slane %v1549, 6
    %1552 = vrot.lane.b32.xlu0 %v1551, 32
    %v1553 = vpop.permute.xlu0 %1552
    %v1554 = vsel %vm160, %v1553, 0
    %1556 = vmatprep.subr.mxu0 0.0
    %1557 = vmatpush1.msra.mxu0 %v1131
    %1558 = vmatprep.subr.mxu0 0.0
    %1559 = vmatpush1.msra.mxu0 %v1132
    %1560 = vmatprep.subr.mxu0 0.0
    %1561 = vmatpush1.msra.mxu0 %v1133
    %1562 = vmatprep.subr.mxu0 0.0
    %1563 = vmatpush1.msra.mxu0 %v1134
    %1564 = vmatprep.subr.mxu0 0.0
    %1565 = vmatpush1.msra.mxu0 0.0
    %1566 = vmatprep.subr.mxu0 0.0
    %1567 = vmatpush1.msra.mxu0 0.0
    %1568 = vmatprep.subr.mxu0 0.0
    %1569 = vmatpush1.msra.mxu0 0.0
    %1570 = vmatprep.subr.mxu0 0.0
    %1571 = vmatpush1.msra.mxu0 0.0
    %1572 = vmatprep.subr.mxu0 0.0
    %1573 = vmatpush1.msra.mxu0 0.0
    %1574 = vmatprep.subr.mxu0 0.0
    %1575 = vmatpush1.msra.mxu0 0.0
    %1576 = vmatprep.subr.mxu0 0.0
    %1577 = vmatpush1.msra.mxu0 0.0
    %1578 = vmatprep.subr.mxu0 0.0
    %1579 = vmatpush1.msra.mxu0 0.0
    %1580 = vmatprep.subr.mxu0 0.0
    %1581 = vmatpush1.msra.mxu0 0.0
    %1582 = vmatprep.subr.mxu0 0.0
    %1583 = vmatpush1.msra.mxu0 0.0
    %1584 = vmatprep.subr.mxu0 0.0
    %1585 = vmatpush1.msra.mxu0 0.0
    %1586 = vmatprep.subr.mxu0 0.0
    %1587 = vmatpush1.msra.mxu0 0.0
    %1588 = vmatprep.subr.mxu0 0.0
    %1589 = vmatpush1.msra.mxu0 0.0
    %1590 = vmatprep.subr.mxu0 0.0
    %1591 = vmatpush1.msra.mxu0 0.0
    %1592 = vmatprep.subr.mxu0 0.0
    %1593 = vmatpush1.msra.mxu0 0.0
    %1594 = vmatprep.subr.mxu0 0.0
    %1595 = vmatpush1.msra.mxu0 0.0
    %1596 = vmatprep.subr.mxu0 0.0
    %1597 = vmatpush1.msra.mxu0 0.0
    %1598 = vmatprep.subr.mxu0 0.0
    %1599 = vmatpush1.msra.mxu0 0.0
    %1600 = vmatprep.subr.mxu0 0.0
    %1601 = vmatpush1.msra.mxu0 0.0
    %1602 = vmatprep.subr.mxu0 0.0
    %1603 = vmatpush1.msra.mxu0 0.0
    %1604 = vmatprep.subr.mxu0 0.0
    %1605 = vmatpush1.msra.mxu0 0.0
    %1606 = vmatprep.subr.mxu0 0.0
    %1607 = vmatpush1.msra.mxu0 0.0
    %1608 = vmatprep.subr.mxu0 0.0
    %1609 = vmatpush1.msra.mxu0 0.0
    %1610 = vmatprep.subr.mxu0 0.0
    %1611 = vmatpush1.msra.mxu0 0.0
    %1612 = vmatprep.subr.mxu0 0.0
    %1613 = vmatpush1.msra.mxu0 0.0
    %1614 = vmatprep.subr.mxu0 0.0
    %1615 = vmatpush1.msra.mxu0 0.0
    %1616 = vmatprep.subr.mxu0 0.0
    %1617 = vmatpush1.msra.mxu0 0.0
    %1618 = vmatprep.subr.mxu0 0.0
    %1619 = vmatpush1.msra.mxu0 0.0
    %1620 = vmatprep.mubr.f32.mxu0 0.0
    %1621 = vmatmul.mubr.f32.gmra.mrb[0].mxu0 %v1554
    %v1622 = vpop.f32.mrb[0].mxu0
    %v1623 = vadd.f32 0.0, %v1622
    %v1624 = vpop.f32.mrb[0].mxu0
    %1625 = vdwg.mxu0
    %v1626 = vadd.f32 %v1128, %v1623
    %v1627 = vxor.u32 %v1626, 2147483648
    %v1628 = vmul.f32 %v1627, 1.442695
    %v1629 = vpow.pop %v1628
    %v1630 = vadd.f32 %v1629, 1.0
    %v1631 = vrcp.pop %v1630
    %v1632 = vmul.f32 1.0, %v1631
    %v1633 = vtanh.pop %v1626
    %v1635 = vrot.slane %v1543, 6
    %v1637 = vmul.f32 %v1632, %v1635
    %1639 = vrot.lane.b32.xlu0 %v1633, 64
    %v1640 = vpop.permute.xlu0 %1639
    %v1642 = vmul.f32 %v1632, %v1640
    %1644 = vrot.lane.b32.xlu0 %v1642, 32
    %v1645 = vpop.permute.xlu0 %1644
    %v1647 = vadd.f32 %v1637, %v1645
    %v1648 = vtanh.pop %v1647
    %1650 = vrot.lane.b32.xlu0 %v1648, 64
    %v1651 = vpop.permute.xlu0 %1650
    %v1653 = vmul.f32 %v1632, %v1651
    %1655 = vrot.lane.b32.xlu0 %v1653, 32
    %v1656 = vpop.permute.xlu0 %1655
    %v1657 = vsel %vm160, %v1656, 0
    %1659 = vmatprep.subr.mxu0 0.0
    %1660 = vmatpush1.msra.mxu0 %v1131
    %1661 = vmatprep.subr.mxu0 0.0
    %1662 = vmatpush1.msra.mxu0 %v1132
    %1663 = vmatprep.subr.mxu0 0.0
    %1664 = vmatpush1.msra.mxu0 %v1133
    %1665 = vmatprep.subr.mxu0 0.0
    %1666 = vmatpush1.msra.mxu0 %v1134
    %1667 = vmatprep.subr.mxu0 0.0
    %1668 = vmatpush1.msra.mxu0 0.0
    %1669 = vmatprep.subr.mxu0 0.0
    %1670 = vmatpush1.msra.mxu0 0.0
    %1671 = vmatprep.subr.mxu0 0.0
    %1672 = vmatpush1.msra.mxu0 0.0
    %1673 = vmatprep.subr.mxu0 0.0
    %1674 = vmatpush1.msra.mxu0 0.0
    %1675 = vmatprep.subr.mxu0 0.0
    %1676 = vmatpush1.msra.mxu0 0.0
    %1677 = vmatprep.subr.mxu0 0.0
    %1678 = vmatpush1.msra.mxu0 0.0
    %1679 = vmatprep.subr.mxu0 0.0
    %1680 = vmatpush1.msra.mxu0 0.0
    %1681 = vmatprep.subr.mxu0 0.0
    %1682 = vmatpush1.msra.mxu0 0.0
    %1683 = vmatprep.subr.mxu0 0.0
    %1684 = vmatpush1.msra.mxu0 0.0
    %1685 = vmatprep.subr.mxu0 0.0
    %1686 = vmatpush1.msra.mxu0 0.0
    %1687 = vmatprep.subr.mxu0 0.0
    %1688 = vmatpush1.msra.mxu0 0.0
    %1689 = vmatprep.subr.mxu0 0.0
    %1690 = vmatpush1.msra.mxu0 0.0
    %1691 = vmatprep.subr.mxu0 0.0
    %1692 = vmatpush1.msra.mxu0 0.0
    %1693 = vmatprep.subr.mxu0 0.0
    %1694 = vmatpush1.msra.mxu0 0.0
    %1695 = vmatprep.subr.mxu0 0.0
    %1696 = vmatpush1.msra.mxu0 0.0
    %1697 = vmatprep.subr.mxu0 0.0
    %1698 = vmatpush1.msra.mxu0 0.0
    %1699 = vmatprep.subr.mxu0 0.0
    %1700 = vmatpush1.msra.mxu0 0.0
    %1701 = vmatprep.subr.mxu0 0.0
    %1702 = vmatpush1.msra.mxu0 0.0
    %1703 = vmatprep.subr.mxu0 0.0
    %1704 = vmatpush1.msra.mxu0 0.0
    %1705 = vmatprep.subr.mxu0 0.0
    %1706 = vmatpush1.msra.mxu0 0.0
    %1707 = vmatprep.subr.mxu0 0.0
    %1708 = vmatpush1.msra.mxu0 0.0
    %1709 = vmatprep.subr.mxu0 0.0
    %1710 = vmatpush1.msra.mxu0 0.0
    %1711 = vmatprep.subr.mxu0 0.0
    %1712 = vmatpush1.msra.mxu0 0.0
    %1713 = vmatprep.subr.mxu0 0.0
    %1714 = vmatpush1.msra.mxu0 0.0
    %1715 = vmatprep.subr.mxu0 0.0
    %1716 = vmatpush1.msra.mxu0 0.0
    %1717 = vmatprep.subr.mxu0 0.0
    %1718 = vmatpush1.msra.mxu0 0.0
    %1719 = vmatprep.subr.mxu0 0.0
    %1720 = vmatpush1.msra.mxu0 0.0
    %1721 = vmatprep.subr.mxu0 0.0
    %1722 = vmatpush1.msra.mxu0 0.0
    %1723 = vmatprep.mubr.f32.mxu0 0.0
    %1724 = vmatmul.mubr.f32.gmra.mrb[0].mxu0 %v1657
    %v1725 = vpop.f32.mrb[0].mxu0
    %v1726 = vadd.f32 0.0, %v1725
    %v1727 = vpop.f32.mrb[0].mxu0
    %1728 = vdwg.mxu0
    %v1730 = vrot.slane %v1726, 6
    %v1732 = vadd.f32 %v1128, %v1730
    %v1733 = vxor.u32 %v1732, 2147483648
    %v1734 = vmul.f32 %v1733, 1.442695
    %v1735 = vpow.pop %v1734
    %v1736 = vadd.f32 %v1735, 1.0
    %v1737 = vrcp.pop %v1736
    %v1738 = vmul.f32 1.0, %v1737
    %v1739 = vtanh.pop %v1732
    %v1741 = vrot.slane %v1647, 6
    %v1743 = vmul.f32 %v1738, %v1741
    %1745 = vrot.lane.b32.xlu0 %v1739, 64
    %v1746 = vpop.permute.xlu0 %1745
    %v1748 = vmul.f32 %v1738, %v1746
    %1750 = vrot.lane.b32.xlu0 %v1748, 32
    %v1751 = vpop.permute.xlu0 %1750
    %v1753 = vadd.f32 %v1743, %v1751
    %v1754 = vtanh.pop %v1753
    %1756 = vrot.lane.b32.xlu0 %v1754, 64
    %v1757 = vpop.permute.xlu0 %1756
    %v1759 = vmul.f32 %v1738, %v1757
    %v1761 = vrot.slane %v1759, 2
    %1762 = vrot.lane.b32.xlu0 %v1761, 32
    %v1763 = vpop.permute.xlu0 %1762
    %v1764 = vsel %vm160, %v1763, 0
    %1766 = vmatprep.subr.mxu0 0.0
    %1767 = vmatpush1.msra.mxu0 %v1131
    %1768 = vmatprep.subr.mxu0 0.0
    %1769 = vmatpush1.msra.mxu0 %v1132
    %1770 = vmatprep.subr.mxu0 0.0
    %1771 = vmatpush1.msra.mxu0 %v1133
    %1772 = vmatprep.subr.mxu0 0.0
    %1773 = vmatpush1.msra.mxu0 %v1134
    %1774 = vmatprep.subr.mxu0 0.0
    %1775 = vmatpush1.msra.mxu0 0.0
    %1776 = vmatprep.subr.mxu0 0.0
    %1777 = vmatpush1.msra.mxu0 0.0
    %1778 = vmatprep.subr.mxu0 0.0
    %1779 = vmatpush1.msra.mxu0 0.0
    %1780 = vmatprep.subr.mxu0 0.0
    %1781 = vmatpush1.msra.mxu0 0.0
    %1782 = vmatprep.subr.mxu0 0.0
    %1783 = vmatpush1.msra.mxu0 0.0
    %1784 = vmatprep.subr.mxu0 0.0
    %1785 = vmatpush1.msra.mxu0 0.0
    %1786 = vmatprep.subr.mxu0 0.0
    %1787 = vmatpush1.msra.mxu0 0.0
    %1788 = vmatprep.subr.mxu0 0.0
    %1789 = vmatpush1.msra.mxu0 0.0
    %1790 = vmatprep.subr.mxu0 0.0
    %1791 = vmatpush1.msra.mxu0 0.0
    %1792 = vmatprep.subr.mxu0 0.0
    %1793 = vmatpush1.msra.mxu0 0.0
    %1794 = vmatprep.subr.mxu0 0.0
    %1795 = vmatpush1.msra.mxu0 0.0
    %1796 = vmatprep.subr.mxu0 0.0
    %1797 = vmatpush1.msra.mxu0 0.0
    %1798 = vmatprep.subr.mxu0 0.0
    %1799 = vmatpush1.msra.mxu0 0.0
    %1800 = vmatprep.subr.mxu0 0.0
    %1801 = vmatpush1.msra.mxu0 0.0
    %1802 = vmatprep.subr.mxu0 0.0
    %1803 = vmatpush1.msra.mxu0 0.0
    %1804 = vmatprep.subr.mxu0 0.0
    %1805 = vmatpush1.msra.mxu0 0.0
    %1806 = vmatprep.subr.mxu0 0.0
    %1807 = vmatpush1.msra.mxu0 0.0
    %1808 = vmatprep.subr.mxu0 0.0
    %1809 = vmatpush1.msra.mxu0 0.0
    %1810 = vmatprep.subr.mxu0 0.0
    %1811 = vmatpush1.msra.mxu0 0.0
    %1812 = vmatprep.subr.mxu0 0.0
    %1813 = vmatpush1.msra.mxu0 0.0
    %1814 = vmatprep.subr.mxu0 0.0
    %1815 = vmatpush1.msra.mxu0 0.0
    %1816 = vmatprep.subr.mxu0 0.0
    %1817 = vmatpush1.msra.mxu0 0.0
    %1818 = vmatprep.subr.mxu0 0.0
    %1819 = vmatpush1.msra.mxu0 0.0
    %1820 = vmatprep.subr.mxu0 0.0
    %1821 = vmatpush1.msra.mxu0 0.0
    %1822 = vmatprep.subr.mxu0 0.0
    %1823 = vmatpush1.msra.mxu0 0.0
    %1824 = vmatprep.subr.mxu0 0.0
    %1825 = vmatpush1.msra.mxu0 0.0
    %1826 = vmatprep.subr.mxu0 0.0
    %1827 = vmatpush1.msra.mxu0 0.0
    %1828 = vmatprep.subr.mxu0 0.0
    %1829 = vmatpush1.msra.mxu0 0.0
    %1830 = vmatprep.mubr.f32.mxu0 0.0
    %1831 = vmatmul.mubr.f32.gmra.mrb[0].mxu0 %v1764
    %v1832 = vpop.f32.mrb[0].mxu0
    %v1833 = vadd.f32 0.0, %v1832
    %v1834 = vpop.f32.mrb[0].mxu0
    %1835 = vdwg.mxu0
    %v1837 = vrot.slane %v1833, 4
    %v1839 = vadd.f32 %v1128, %v1837
    %v1840 = vxor.u32 %v1839, 2147483648
    %v1841 = vmul.f32 %v1840, 1.442695
    %v1842 = vpow.pop %v1841
    %v1843 = vadd.f32 %v1842, 1.0
    %v1844 = vrcp.pop %v1843
    %v1845 = vmul.f32 1.0, %v1844
    %v1846 = vtanh.pop %v1839
    %v1848 = vrot.slane %v1753, 6
    %v1850 = vmul.f32 %v1845, %v1848
    %1852 = vrot.lane.b32.xlu0 %v1846, 64
    %v1853 = vpop.permute.xlu0 %1852
    %v1855 = vmul.f32 %v1845, %v1853
    %1857 = vrot.lane.b32.xlu0 %v1855, 32
    %v1858 = vpop.permute.xlu0 %1857
    %v1860 = vadd.f32 %v1850, %v1858
    %v1861 = vtanh.pop %v1860
    %1863 = vrot.lane.b32.xlu0 %v1861, 64
    %v1864 = vpop.permute.xlu0 %1863
    %v1866 = vmul.f32 %v1845, %v1864
    %v1868 = vrot.slane %v1866, 4
    %1869 = vrot.lane.b32.xlu0 %v1868, 32
    %v1870 = vpop.permute.xlu0 %1869
    %v1871 = vsel %vm160, %v1870, 0
    %1873 = vmatprep.subr.mxu0 0.0
    %1874 = vmatpush1.msra.mxu0 %v1131
    %1875 = vmatprep.subr.mxu0 0.0
    %1876 = vmatpush1.msra.mxu0 %v1132
    %1877 = vmatprep.subr.mxu0 0.0
    %1878 = vmatpush1.msra.mxu0 %v1133
    %1879 = vmatprep.subr.mxu0 0.0
    %1880 = vmatpush1.msra.mxu0 %v1134
    %1881 = vmatprep.subr.mxu0 0.0
    %1882 = vmatpush1.msra.mxu0 0.0
    %1883 = vmatprep.subr.mxu0 0.0
    %1884 = vmatpush1.msra.mxu0 0.0
    %1885 = vmatprep.subr.mxu0 0.0
    %1886 = vmatpush1.msra.mxu0 0.0
    %1887 = vmatprep.subr.mxu0 0.0
    %1888 = vmatpush1.msra.mxu0 0.0
    %1889 = vmatprep.subr.mxu0 0.0
    %1890 = vmatpush1.msra.mxu0 0.0
    %1891 = vmatprep.subr.mxu0 0.0
    %1892 = vmatpush1.msra.mxu0 0.0
    %1893 = vmatprep.subr.mxu0 0.0
    %1894 = vmatpush1.msra.mxu0 0.0
    %1895 = vmatprep.subr.mxu0 0.0
    %1896 = vmatpush1.msra.mxu0 0.0
    %1897 = vmatprep.subr.mxu0 0.0
    %1898 = vmatpush1.msra.mxu0 0.0
    %1899 = vmatprep.subr.mxu0 0.0
    %1900 = vmatpush1.msra.mxu0 0.0
    %1901 = vmatprep.subr.mxu0 0.0
    %1902 = vmatpush1.msra.mxu0 0.0
    %1903 = vmatprep.subr.mxu0 0.0
    %1904 = vmatpush1.msra.mxu0 0.0
    %1905 = vmatprep.subr.mxu0 0.0
    %1906 = vmatpush1.msra.mxu0 0.0
    %1907 = vmatprep.subr.mxu0 0.0
    %1908 = vmatpush1.msra.mxu0 0.0
    %1909 = vmatprep.subr.mxu0 0.0
    %1910 = vmatpush1.msra.mxu0 0.0
    %1911 = vmatprep.subr.mxu0 0.0
    %1912 = vmatpush1.msra.mxu0 0.0
    %1913 = vmatprep.subr.mxu0 0.0
    %1914 = vmatpush1.msra.mxu0 0.0
    %1915 = vmatprep.subr.mxu0 0.0
    %1916 = vmatpush1.msra.mxu0 0.0
    %1917 = vmatprep.subr.mxu0 0.0
    %1918 = vmatpush1.msra.mxu0 0.0
    %1919 = vmatprep.subr.mxu0 0.0
    %1920 = vmatpush1.msra.mxu0 0.0
    %1921 = vmatprep.subr.mxu0 0.0
    %1922 = vmatpush1.msra.mxu0 0.0
    %1923 = vmatprep.subr.mxu0 0.0
    %1924 = vmatpush1.msra.mxu0 0.0
    %1925 = vmatprep.subr.mxu0 0.0
    %1926 = vmatpush1.msra.mxu0 0.0
    %1927 = vmatprep.subr.mxu0 0.0
    %1928 = vmatpush1.msra.mxu0 0.0
    %1929 = vmatprep.subr.mxu0 0.0
    %1930 = vmatpush1.msra.mxu0 0.0
    %1931 = vmatprep.subr.mxu0 0.0
    %1932 = vmatpush1.msra.mxu0 0.0
    %1933 = vmatprep.subr.mxu0 0.0
    %1934 = vmatpush1.msra.mxu0 0.0
    %1935 = vmatprep.subr.mxu0 0.0
    %1936 = vmatpush1.msra.mxu0 0.0
    %1937 = vmatprep.mubr.f32.mxu0 0.0
    %1938 = vmatmul.mubr.f32.gmra.mrb[0].mxu0 %v1871
    %v1939 = vpop.f32.mrb[0].mxu0
    %v1940 = vadd.f32 0.0, %v1939
    %v1941 = vpop.f32.mrb[0].mxu0
    %1942 = vdwg.mxu0
    %v1944 = vrot.slane %v1940, 2
    %v1946 = vadd.f32 %v1128, %v1944
    %v1947 = vxor.u32 %v1946, 2147483648
    %v1948 = vmul.f32 %v1947, 1.442695
    %v1949 = vpow.pop %v1948
    %v1950 = vadd.f32 %v1949, 1.0
    %v1951 = vrcp.pop %v1950
    %v1952 = vmul.f32 1.0, %v1951
    %v1953 = vtanh.pop %v1946
    %v1955 = vrot.slane %v1860, 6
    %v1957 = vmul.f32 %v1952, %v1955
    %1959 = vrot.lane.b32.xlu0 %v1953, 64
    %v1960 = vpop.permute.xlu0 %1959
    %v1962 = vmul.f32 %v1952, %v1960
    %1964 = vrot.lane.b32.xlu0 %v1962, 32
    %v1965 = vpop.permute.xlu0 %1964
    %v1967 = vadd.f32 %v1957, %v1965
    %v1968 = vtanh.pop %v1967
    %1970 = vrot.lane.b32.xlu0 %v1968, 64
    %v1971 = vpop.permute.xlu0 %1970
    %v1973 = vmul.f32 %v1952, %v1971
    %1975 = vrot.lane.b32.xlu0 %v1973, 32
    %v1976 = vpop.permute.xlu0 %1975
    %1978 = vst.msk [vmem:[#allocation3 - $0x4] sm:$0xc0] %vm596, %v1976
    %v1979 = vld [vmem:[#allocation3] sm:$0xf]
    %vm1980 = vcmp.ge.f32.partialorder %v1979, 0.0
    %v1981 = vmul.f32 %v1979, 0.01
    %v1982 = vsel %vm1980, %v1979, %v1981
    %v1983 = vld [vmem:[%s7] sm:$0xff]
    %v1984 = vld [vmem:[%s7 + $0x8] sm:$0xff]
    %v1985 = vld [vmem:[%s7 + $0x10] sm:$0xff]
    %v1986 = vld [vmem:[%s7 + $0x18] sm:$0xff]
    %v1987 = vld [vmem:[#allocation4] sm:$0x1]
    %v1989 = vlaneseq
    %v1990 = vshrl.u32 %v1989, 7
    %v1991 = vsub.s32 0, %v1990
    %v1992 = vrot.slane %v1987, %v1991
    %v1995 = vsel %vm160, %v1982, 0
    %1997 = vmatprep.subr.mxu0 0.0
    %1998 = vmatpush1.msra.mxu0 %v1983
    %1999 = vmatprep.subr.mxu0 0.0
    %2000 = vmatpush1.msra.mxu0 %v1984
    %2001 = vmatprep.subr.mxu0 0.0
    %2002 = vmatpush1.msra.mxu0 %v1985
    %2003 = vmatprep.subr.mxu0 0.0
    %2004 = vmatpush1.msra.mxu0 %v1986
    %2005 = vmatprep.subr.mxu0 0.0
    %2006 = vmatpush1.msra.mxu0 0.0
    %2007 = vmatprep.subr.mxu0 0.0
    %2008 = vmatpush1.msra.mxu0 0.0
    %2009 = vmatprep.subr.mxu0 0.0
    %2010 = vmatpush1.msra.mxu0 0.0
    %2011 = vmatprep.subr.mxu0 0.0
    %2012 = vmatpush1.msra.mxu0 0.0
    %2013 = vmatprep.subr.mxu0 0.0
    %2014 = vmatpush1.msra.mxu0 0.0
    %2015 = vmatprep.subr.mxu0 0.0
    %2016 = vmatpush1.msra.mxu0 0.0
    %2017 = vmatprep.subr.mxu0 0.0
    %2018 = vmatpush1.msra.mxu0 0.0
    %2019 = vmatprep.subr.mxu0 0.0
    %2020 = vmatpush1.msra.mxu0 0.0
    %2021 = vmatprep.subr.mxu0 0.0
    %2022 = vmatpush1.msra.mxu0 0.0
    %2023 = vmatprep.subr.mxu0 0.0
    %2024 = vmatpush1.msra.mxu0 0.0
    %2025 = vmatprep.subr.mxu0 0.0
    %2026 = vmatpush1.msra.mxu0 0.0
    %2027 = vmatprep.subr.mxu0 0.0
    %2028 = vmatpush1.msra.mxu0 0.0
    %2029 = vmatprep.subr.mxu0 0.0
    %2030 = vmatpush1.msra.mxu0 0.0
    %2031 = vmatprep.subr.mxu0 0.0
    %2032 = vmatpush1.msra.mxu0 0.0
    %2033 = vmatprep.subr.mxu0 0.0
    %2034 = vmatpush1.msra.mxu0 0.0
    %2035 = vmatprep.subr.mxu0 0.0
    %2036 = vmatpush1.msra.mxu0 0.0
    %2037 = vmatprep.subr.mxu0 0.0
    %2038 = vmatpush1.msra.mxu0 0.0
    %2039 = vmatprep.subr.mxu0 0.0
    %2040 = vmatpush1.msra.mxu0 0.0
    %2041 = vmatprep.subr.mxu0 0.0
    %2042 = vmatpush1.msra.mxu0 0.0
    %2043 = vmatprep.subr.mxu0 0.0
    %2044 = vmatpush1.msra.mxu0 0.0
    %2045 = vmatprep.subr.mxu0 0.0
    %2046 = vmatpush1.msra.mxu0 0.0
    %2047 = vmatprep.subr.mxu0 0.0
    %2048 = vmatpush1.msra.mxu0 0.0
    %2049 = vmatprep.subr.mxu0 0.0
    %2050 = vmatpush1.msra.mxu0 0.0
    %2051 = vmatprep.subr.mxu0 0.0
    %2052 = vmatpush1.msra.mxu0 0.0
    %2053 = vmatprep.subr.mxu0 0.0
    %2054 = vmatpush1.msra.mxu0 0.0
    %2055 = vmatprep.subr.mxu0 0.0
    %2056 = vmatpush1.msra.mxu0 0.0
    %2057 = vmatprep.subr.mxu0 0.0
    %2058 = vmatpush1.msra.mxu0 0.0
    %2059 = vmatprep.subr.mxu0 0.0
    %2060 = vmatpush1.msra.mxu0 0.0
    %2061 = vmatprep.mubr.f32.mxu0 0.0
    %2062 = vmatmul.mubr.f32.gmra.mrb[0].mxu0 %v1995
    %v2063 = vpop.f32.mrb[0].mxu0
    %v2064 = vadd.f32 %v1992, %v2063
    %v2065 = vpop.f32.mrb[0].mxu0
    %2066 = vdwg.mxu0
    %vm2067 = vcmp.ge.f32.partialorder %v2064, 0.0
    %v2068 = vmul.f32 %v2064, 0.01
    %v2069 = vsel %vm2067, %v2064, %v2068
    %v2070 = vld [vmem:[%s9] sm:$0xff]
    %v2071 = vld [vmem:[%s9 + $0x8] sm:$0xff]
    %v2072 = vld [vmem:[#allocation7] sm:$0x1]
    %v2074 = vlaneseq
    %v2075 = vshrl.u32 %v2074, 7
    %v2076 = vsub.s32 0, %v2075
    %v2077 = vrot.slane %v2072, %v2076
    %v2080 = vsel %vm74, %v2069, 0
    %2082 = vmatprep.subr.mxu0 0.0
    %2083 = vmatpush1.msra.mxu0 %v2070
    %2084 = vmatprep.subr.mxu0 0.0
    %2085 = vmatpush1.msra.mxu0 %v2071
    %2086 = vmatprep.subr.mxu0 0.0
    %2087 = vmatpush1.msra.mxu0 0.0
    %2088 = vmatprep.subr.mxu0 0.0
    %2089 = vmatpush1.msra.mxu0 0.0
    %2090 = vmatprep.subr.mxu0 0.0
    %2091 = vmatpush1.msra.mxu0 0.0
    %2092 = vmatprep.subr.mxu0 0.0
    %2093 = vmatpush1.msra.mxu0 0.0
    %2094 = vmatprep.subr.mxu0 0.0
    %2095 = vmatpush1.msra.mxu0 0.0
    %2096 = vmatprep.subr.mxu0 0.0
    %2097 = vmatpush1.msra.mxu0 0.0
    %2098 = vmatprep.subr.mxu0 0.0
    %2099 = vmatpush1.msra.mxu0 0.0
    %2100 = vmatprep.subr.mxu0 0.0
    %2101 = vmatpush1.msra.mxu0 0.0
    %2102 = vmatprep.subr.mxu0 0.0
    %2103 = vmatpush1.msra.mxu0 0.0
    %2104 = vmatprep.subr.mxu0 0.0
    %2105 = vmatpush1.msra.mxu0 0.0
    %2106 = vmatprep.subr.mxu0 0.0
    %2107 = vmatpush1.msra.mxu0 0.0
    %2108 = vmatprep.subr.mxu0 0.0
    %2109 = vmatpush1.msra.mxu0 0.0
    %2110 = vmatprep.subr.mxu0 0.0
    %2111 = vmatpush1.msra.mxu0 0.0
    %2112 = vmatprep.subr.mxu0 0.0
    %2113 = vmatpush1.msra.mxu0 0.0
    %2114 = vmatprep.subr.mxu0 0.0
    %2115 = vmatpush1.msra.mxu0 0.0
    %2116 = vmatprep.subr.mxu0 0.0
    %2117 = vmatpush1.msra.mxu0 0.0
    %2118 = vmatprep.subr.mxu0 0.0
    %2119 = vmatpush1.msra.mxu0 0.0
    %2120 = vmatprep.subr.mxu0 0.0
    %2121 = vmatpush1.msra.mxu0 0.0
    %2122 = vmatprep.subr.mxu0 0.0
    %2123 = vmatpush1.msra.mxu0 0.0
    %2124 = vmatprep.subr.mxu0 0.0
    %2125 = vmatpush1.msra.mxu0 0.0
    %2126 = vmatprep.subr.mxu0 0.0
    %2127 = vmatpush1.msra.mxu0 0.0
    %2128 = vmatprep.subr.mxu0 0.0
    %2129 = vmatpush1.msra.mxu0 0.0
    %2130 = vmatprep.subr.mxu0 0.0
    %2131 = vmatpush1.msra.mxu0 0.0
    %2132 = vmatprep.subr.mxu0 0.0
    %2133 = vmatpush1.msra.mxu0 0.0
    %2134 = vmatprep.subr.mxu0 0.0
    %2135 = vmatpush1.msra.mxu0 0.0
    %2136 = vmatprep.subr.mxu0 0.0
    %2137 = vmatpush1.msra.mxu0 0.0
    %2138 = vmatprep.subr.mxu0 0.0
    %2139 = vmatpush1.msra.mxu0 0.0
    %2140 = vmatprep.subr.mxu0 0.0
    %2141 = vmatpush1.msra.mxu0 0.0
    %2142 = vmatprep.subr.mxu0 0.0
    %2143 = vmatpush1.msra.mxu0 0.0
    %2144 = vmatprep.subr.mxu0 0.0
    %2145 = vmatpush1.msra.mxu0 0.0
    %2146 = vmatprep.mubr.f32.mxu0 0.0
    %2147 = vmatmul.mubr.f32.gmra.mrb[0].mxu0 %v2080
    %v2148 = vpop.f32.mrb[0].mxu0
    %v2149 = vadd.f32 %v2077, %v2148
    %v2150 = vpop.f32.mrb[0].mxu0
    %2151 = vdwg.mxu0
    %vm2152 = vcmask 27648
    %2153 = vst.msk [vmem:[#allocation9] sm:$0xf] %vm2152, %v2149
    // Predicated region
    $region54: #{vanilla_lstm_forward.1} parent=1 // pred_check
      _
    $region55: #{vanilla_lstm_forward.1} parent=1 // pred_check_branch
      %2155 = sbr.rel (0) target = $region57
    $region56: #{vanilla_lstm_forward.1} parent=1 // pred_region
      %s2157 = ssub.s32 64, 64
      %2158 = vsyncadd [#allocation6], %s2157
      %s2160 = sshll.u32 [#allocation9], 4
      %s2161 = int_to_ptr.vmem [resolvable:$true] %s2160
      %2163 = dma.vmem_to_hbm [thread:$0]  %s2161, 64, %s11, [#allocation6]
    $region57: #{vanilla_lstm_forward.1} parent=1 // pred_fallthru
      _
    // Predicated region
    $region58: #{vanilla_lstm_forward.1} parent=1 // pred_check
      _
    $region59: #{vanilla_lstm_forward.1} parent=1 // pred_check_branch
      %2165 = sbr.rel (0) target = $region61
    $region60: #{vanilla_lstm_forward.1} parent=1 // pred_region
      %2166 = dma.done [#allocation6], 64
    $region61: #{vanilla_lstm_forward.1} parent=1 // pred_fallthru
      _
    %2167 = vsyncpa [#allocation5], 1
    %2168 = vsyncpa [#allocation8], 1
    %2169 = vsyncpa [#allocation6], 1

</llo_original>
